<compile_context>
chip_gen: v6e
topology: v6e:2x2x1
jax: 0.10.0
libtpu: 0.0.40
codegen_flags: <defaults>
</compile_context>

<pallas_src>
import functools
import math

import jax
import jax.numpy as jnp
from jax.experimental import pallas as pl
from jax.experimental.pallas import tpu as pltpu

_LN_EPS = 1e-5
_INV_SQRT2 = 0.7071067811865476


@functools.lru_cache(maxsize=None)
def _vmem_limit_bytes():
    """Generation-aware scoped-VMEM limit (~70% of physical VMEM)."""
    try:
        cap = int(pltpu.get_tpu_info().vmem_capacity_bytes)
        if cap <= 0:
            raise ValueError
        return max(32 * 1024 * 1024, min(int(cap * 0.7), 112 * 1024 * 1024))
    except Exception:
        return 64 * 1024 * 1024


def _round_up(x, m):
    return (x + m - 1) // m * m


def _pick_tile(n, t_max):
    """Largest tile <= t_max that is a multiple of 8 and divides n (else n)."""
    if n <= t_max:
        return n
    t = (t_max // 8) * 8
    while t >= 8:
        if n % t == 0:
            return t
        t -= 8
    return n


def _layernorm_f32(x, gamma, beta):
    x = x.astype(jnp.float32)
    mu = jnp.mean(x, axis=-1, keepdims=True)
    xc = x - mu
    var = jnp.mean(xc * xc, axis=-1, keepdims=True)
    xn = xc * jax.lax.rsqrt(var + _LN_EPS)
    return xn * gamma.astype(jnp.float32) + beta.astype(jnp.float32)


# ----------------------------------------------------------------------------
# FeedForward block kernel: LN -> W1 -> GELU -> W2 -> LayerScale -> residual
# grid = (num_M_tiles "parallel", num_hidden_chunks "arbitrary")
# ----------------------------------------------------------------------------
def _ffn_block_kernel(x_ref, lng_ref, lnb_ref, w1_ref, b1_ref, w2_ref, b2_ref,
                      ls_ref, o_ref, xn_scr, acc_scr, *, approximate_gelu):
    k = pl.program_id(1)
    nk = pl.num_programs(1)

    @pl.when(k == 0)
    def _init():
        xn = _layernorm_f32(x_ref[...], lng_ref[...], lnb_ref[...])
        xn_scr[...] = xn.astype(xn_scr.dtype)      # stored in matmul dtype
        acc_scr[...] = jnp.zeros_like(acc_scr)

    # (TM, D) @ (D, TH) on the MXU; operands in parameter dtype, f32 accumulate.
    h = jnp.dot(xn_scr[...], w1_ref[...], preferred_element_type=jnp.float32)
    h = h + b1_ref[...].astype(jnp.float32)
    if approximate_gelu:
        # tanh-approx GELU uses the EUP (frees VALU slots); small parity delta.
        h = 0.5 * h * (1.0 + jnp.tanh(0.7978845608028654
                                      * (h + 0.044715 * h * h * h)))
    else:
        # Exact erf GELU (torch.nn.GELU default).
        h = 0.5 * h * (1.0 + jax.lax.erf(h * _INV_SQRT2))
    acc_scr[...] += jnp.dot(h.astype(w2_ref.dtype), w2_ref[...],
                            preferred_element_type=jnp.float32)

    @pl.when(k == nk - 1)
    def _finalize():
        y = acc_scr[...] + b2_ref[...].astype(jnp.float32)
        y = y * ls_ref[...].astype(jnp.float32)          # LayerScale
        y = y + x_ref[...].astype(jnp.float32)           # residual
        o_ref[...] = y.astype(o_ref.dtype)


def _pick_hidden_chunk(hidden, d, w_itemsize, vmem_limit):
    # Budget the (double-buffered) W1 column-chunk + W2 row-chunk under ~1/3
    # of the scoped-VMEM limit; chunks must divide `hidden` exactly (no
    # masking in the accumulation path).
    budget = vmem_limit // 3
    per_col = 2 * 2 * d * w_itemsize            # 2 weights x 2 pipeline buffers
    th_cap = max(128, budget // max(per_col, 1))
    if hidden <= th_cap:
        return hidden
    best = None
    th = 128
    while th <= min(hidden - 1, th_cap):
        if hidden % th == 0:
            best = th
        th += 128
    if best is not None:
        return best
    # No lane-aligned divisor under the cap: keep weights resident (correct,
    # may exceed the soft budget).
    return hidden


def ffn_block(x, p, *, tm=512, approximate_gelu=False):
    """Fused PreNorm -> FeedForward -> LayerScale -> residual.  x: (B, S, D)."""
    B, S, D = x.shape
    M = B * S
    hidden = p["w1_t"].shape[1]
    dtype = x.dtype
    w_itemsize = jnp.dtype(p["w1_t"].dtype).itemsize
    vmem_limit = _vmem_limit_bytes()

    TM = _pick_tile(M, tm)
    if TM == M and M > tm:
        # No clean divisor of M: pad (extra HBM pass -- rare fallback only).
        TM = max(8, (tm // 8) * 8)
        Mp = _round_up(M, TM)
    else:
        Mp = M
    TH = _pick_hidden_chunk(hidden, D, w_itemsize, vmem_limit)

    x2d = x.reshape(M, D)
    if Mp != M:
        x2d = jnp.pad(x2d, ((0, Mp - M), (0, 0)))

    n_m = Mp // TM
    n_k = hidden // TH
    # NOTE: when TH < hidden the W1/W2 chunks are re-fetched once per M tile.
    # TODO(synk): on v5e/v6e add pipeline_mode=pl.Buffered(3) to the weight
    # chunk specs when profiling shows exposed weight DMA (keep 2 on v7x).
    refetch = n_m if n_k > 1 else 1
    cost = pl.CostEstimate(
        flops=4 * Mp * D * hidden,
        transcendentals=Mp * hidden,
        bytes_accessed=(2 * Mp * D * jnp.dtype(dtype).itemsize
                        + refetch * 2 * D * hidden * w_itemsize),
    )

    kernel = functools.partial(_ffn_block_kernel,
                               approximate_gelu=approximate_gelu)
    out = pl.pallas_call(
        kernel,
        out_shape=jax.ShapeDtypeStruct((Mp, D), dtype),
        grid_spec=pltpu.PrefetchScalarGridSpec(
            num_scalar_prefetch=0,
            grid=(n_m, n_k),
            in_specs=[
                pl.BlockSpec((TM, D), lambda i, k: (i, 0)),   # x tile (pipelined)
                pl.BlockSpec((1, D), lambda i, k: (0, 0)),    # LN gamma
                pl.BlockSpec((1, D), lambda i, k: (0, 0)),    # LN beta
                pl.BlockSpec((D, TH), lambda i, k: (0, k)),   # W1 chunk
                pl.BlockSpec((1, TH), lambda i, k: (0, k)),   # b1 chunk
                pl.BlockSpec((TH, D), lambda i, k: (k, 0)),   # W2 chunk
                pl.BlockSpec((1, D), lambda i, k: (0, 0)),    # b2
                pl.BlockSpec((1, D), lambda i, k: (0, 0)),    # LayerScale
            ],
            out_specs=pl.BlockSpec((TM, D), lambda i, k: (i, 0)),
            scratch_shapes=[
                pltpu.VMEM((TM, D), p["w1_t"].dtype),         # normalized x
                pltpu.VMEM((TM, D), jnp.float32),             # f32 accumulator
            ],
        ),
        compiler_params=pltpu.CompilerParams(
            dimension_semantics=("parallel", "arbitrary"),
            vmem_limit_bytes=vmem_limit),
        cost_estimate=cost,
    )(x2d, p["ln_g"], p["ln_b"], p["w1_t"], p["b1"], p["w2_t"], p["b2"], p["ls"])

    if Mp != M:
        out = out[:M]
    return out.reshape(B, S, D)


# ----------------------------------------------------------------------------
# Attention block kernel: LN -> QKV -> talking-heads attention -> out proj
# -> LayerScale -> residual.  grid = (batch "parallel", q_tiles "arbitrary").
# ----------------------------------------------------------------------------
def _attn_block_kernel(x_ref, lng_ref, lnb_ref, wq_ref, wk_ref, wv_ref,
                       prew_ref, mixpost_ref, wo_ref, bo_ref, ls_ref,
                       o_ref, xn_scr, k_scr, v_scr, *, heads, dim_head, tq):
    qi = pl.program_id(1)
    G, dh = heads, dim_head

    # --- once per batch element: LayerNorm + K / per-head V into VMEM --------
    @pl.when(qi == 0)
    def _build_kv():
        xn = _layernorm_f32(x_ref[...], lng_ref[...], lnb_ref[...])
        xn = xn.astype(xn_scr.dtype)
        xn_scr[...] = xn
        k_scr[...] = jnp.dot(xn, wk_ref[...],
                             preferred_element_type=jnp.float32
                             ).astype(k_scr.dtype)
        v = jnp.dot(xn, wv_ref[...], preferred_element_type=jnp.float32)
        for g in range(G):                                   # (G, S, dh) layout
            v_scr[g] = v[:, g * dh:(g + 1) * dh].astype(v_scr.dtype)

    # --- per q-tile ----------------------------------------------------------
    q0 = pl.multiple_of(qi * tq, tq)
    xn_q = xn_scr[pl.ds(q0, tq), :]                          # (Tq, D)
    # 1/sqrt(dh) is folded into wq_t at param-build time.
    q = jnp.dot(xn_q, wq_ref[...], preferred_element_type=jnp.float32)

    # Pre-softmax talking-heads mix folded into the Q operand:
    #   logits[g*Tq+i, j] = sum_c (q[i,c] * prew[g,c]) * k[j,c]
    #                     = sum_h mix_pre[h,g] * (q_h . k_h)   (full-K matmul)
    prew = prew_ref[...].astype(jnp.float32)                 # (G, inner)
    q_big = jnp.concatenate(
        [q * prew[g:g + 1, :] for g in range(G)], axis=0)    # (G*Tq, inner)
    logits = jax.lax.dot_general(
        q_big.astype(k_scr.dtype), k_scr[...],
        (((1,), (1,)), ((), ())),
        preferred_element_type=jnp.float32)                  # (G*Tq, S)

    # Row-wise softmax (exact, for parity with the torch reference).
    m = jnp.max(logits, axis=-1, keepdims=True)
    e = jnp.exp(logits - m)
    a2 = e / jnp.sum(e, axis=-1, keepdims=True)

    # Post-softmax talking-heads mix on the stacked probs (SMEM scalars).
    a_heads = [a2[g * tq:(g + 1) * tq, :] for g in range(G)]
    mixed = []
    for go in range(G):
        acc = a_heads[0] * mixpost_ref[0, go]
        for g in range(1, G):
            acc = acc + a_heads[g] * mixpost_ref[g, go]
        mixed.append(acc)
    b3 = jnp.stack(mixed).astype(v_scr.dtype)                # (G, Tq, S)

    # Batched-over-heads attention @ V, then one full-K output projection.
    ov = jax.lax.dot_general(
        b3, v_scr[...],
        (((2,), (1,)), ((0,), (0,))),
        preferred_element_type=jnp.float32)                  # (G, Tq, dh)
    out_cat = jnp.concatenate([ov[g] for g in range(G)], axis=-1)  # (Tq, inner)

    y = jnp.dot(out_cat.astype(wo_ref.dtype), wo_ref[...],
                preferred_element_type=jnp.float32)           # (Tq, D)
    y = y + bo_ref[...].astype(jnp.float32)
    y = y * ls_ref[...].astype(jnp.float32)                   # LayerScale
    y = y + x_ref[pl.ds(q0, tq), :].astype(jnp.float32)       # residual (re-read)
    o_ref[...] = y.astype(o_ref.dtype)


def attn_block(x, p, *, tq=256):
    """Fused PreNorm -> talking-heads Attention -> LayerScale -> residual."""
    B, S, D = x.shape
    heads = p["heads"]
    inner = p["wq_t"].shape[1]
    dh = inner // heads
    dtype = x.dtype
    w_itemsize = jnp.dtype(p["wq_t"].dtype).itemsize
    vmem_limit = _vmem_limit_bytes()

    TQ = _pick_tile(S, tq)
    n_q = S // TQ

    kernel = functools.partial(_attn_block_kernel, heads=heads, dim_head=dh,
                               tq=TQ)
    cost = pl.CostEstimate(
        flops=B * (6 * S * D * inner + 2 * heads * S * S * inner
                   + 2 * S * S * inner + 2 * S * inner * D
                   + 2 * heads * heads * S * S),
        transcendentals=B * heads * S * S,
        bytes_accessed=(2 * B * S * D * jnp.dtype(dtype).itemsize
                        + (4 * D * inner + heads * inner + 4 * D) * w_itemsize
                        + heads * heads * 4),
    )

    return pl.pallas_call(
        kernel,
        out_shape=jax.ShapeDtypeStruct((B, S, D), dtype),
        grid_spec=pltpu.PrefetchScalarGridSpec(
            num_scalar_prefetch=0,
            grid=(B, n_q),
            in_specs=[
                # x for batch b: resident across its q-tiles (DMA once / batch).
                pl.BlockSpec((None, S, D), lambda b, i: (b, 0, 0)),
                pl.BlockSpec((1, D), lambda b, i: (0, 0)),          # LN gamma
                pl.BlockSpec((1, D), lambda b, i: (0, 0)),          # LN beta
                pl.BlockSpec((D, inner), lambda b, i: (0, 0)),      # Wq (scaled)
                pl.BlockSpec((D, inner), lambda b, i: (0, 0)),      # Wk
                pl.BlockSpec((D, inner), lambda b, i: (0, 0)),      # Wv
                pl.BlockSpec((heads, inner), lambda b, i: (0, 0)),  # pre-mix (expanded)
                pl.BlockSpec(memory_space=pltpu.MemorySpace.SMEM),  # post-mix (H,H)
                pl.BlockSpec((inner, D), lambda b, i: (0, 0)),      # Wo
                pl.BlockSpec((1, D), lambda b, i: (0, 0)),          # bo
                pl.BlockSpec((1, D), lambda b, i: (0, 0)),          # LayerScale
            ],
            out_specs=pl.BlockSpec((None, TQ, D), lambda b, i: (b, i, 0)),
            scratch_shapes=[
                pltpu.VMEM((S, D), p["wq_t"].dtype),                # LN(x) cache
                pltpu.VMEM((S, inner), p["wq_t"].dtype),            # K cache
                pltpu.VMEM((heads, S, dh), p["wq_t"].dtype),        # per-head V
            ],
        ),
        # q-tile axis must be "arbitrary": the K/V scratch built at q_tile==0
        # is carried across it.  Batch axis is "parallel" for megacore.
        compiler_params=pltpu.CompilerParams(
            dimension_semantics=("parallel", "arbitrary"),
            vmem_limit_bytes=vmem_limit),
        cost_estimate=cost,
    )(x, p["ln_g"], p["ln_b"], p["wq_t"], p["wk_t"], p["wv_t"],
      p["mix_pre_w"], p["mix_post"], p["wo_t"], p["bo"], p["ls"])


def transformer_forward(x, layers, *, tq=256, tm=512, approximate_gelu=False):
    # TODO(synk): cross-attention context concatenation and dropout /
    # layer_dropout > 0 are not implemented; with the module defaults
    # (context=None, dropout=0, layer_dropout=0) they are identities.
    for attn_p, ffn_p in layers:
        x = attn_block(x, attn_p, tq=tq)
        x = ffn_block(x, ffn_p, tm=tm, approximate_gelu=approximate_gelu)
    return x


# ----------------------------------------------------------------------------
# Parameter construction.  Weights stored pre-transposed (in, out); the
# 1/sqrt(dim_head) attention scale and the pre-softmax head-mix expansion are
# baked in ONCE here (zero runtime cost).
# ----------------------------------------------------------------------------
def init_transformer_params(key, *, dim, depth, heads, dim_head, mlp_dim,
                            dtype=jnp.float32):
    inner = heads * dim_head
    scale = dim_head ** -0.5
    layers = []
    for ind in range(depth):
        d_ind = ind + 1
        init_eps = 0.1 if d_ind <= 18 else (1e-5 if d_ind <= 24 else 1e-6)
        key, *ks = jax.random.split(key, 16)

        bq = 1.0 / math.sqrt(dim)
        wq = jax.random.uniform(ks[0], (inner, dim), jnp.float32, -bq, bq)
        wkv = jax.random.uniform(ks[1], (2 * inner, dim), jnp.float32, -bq, bq)
        wk, wv = wkv[:inner], wkv[inner:]
        bo_b = 1.0 / math.sqrt(inner)
        wo = jax.random.uniform(ks[2], (dim, inner), jnp.float32, -bo_b, bo_b)
        bo = jax.random.uniform(ks[3], (dim,), jnp.float32, -bo_b, bo_b)
        mix_pre = jax.random.normal(ks[4], (heads, heads), jnp.float32)
        mix_post = jax.random.normal(ks[5], (heads, heads), jnp.float32)
        # pre_w[g, h*dh + d] = mix_pre[h, g]  (pre-softmax mix folded into Q).
        pre_w = jnp.repeat(mix_pre.T, dim_head, axis=1)
        attn_p = {
            "heads": heads,
            "ln_g": (1.0 + 0.05 * jax.random.normal(ks[6], (dim,))).reshape(1, dim).astype(dtype),
            "ln_b": (0.05 * jax.random.normal(ks[7], (dim,))).reshape(1, dim).astype(dtype),
            "wq_t": (wq.T * scale).astype(dtype),        # (dim, inner), scale folded in
            "wk_t": wk.T.astype(dtype),
            "wv_t": wv.T.astype(dtype),
            "mix_pre": mix_pre,                          # raw (for reference)
            "mix_pre_w": pre_w.astype(dtype),            # (heads, inner)
            "mix_post": mix_post,                        # (heads, heads), SMEM
            "wo_t": wo.T.astype(dtype),                  # (inner, dim)
            "bo": bo.reshape(1, dim).astype(dtype),
            "ls": jnp.full((1, dim), init_eps, dtype),
        }

        b1_b = 1.0 / math.sqrt(dim)
        w1 = jax.random.uniform(ks[8], (mlp_dim, dim), jnp.float32, -b1_b, b1_b)
        b1 = jax.random.uniform(ks[9], (mlp_dim,), jnp.float32, -b1_b, b1_b)
        b2_b = 1.0 / math.sqrt(mlp_dim)
        w2 = jax.random.uniform(ks[10], (dim, mlp_dim), jnp.float32, -b2_b, b2_b)
        b2 = jax.random.uniform(ks[11], (dim,), jnp.float32, -b2_b, b2_b)
        ffn_p = {
            "ln_g": (1.0 + 0.05 * jax.random.normal(ks[12], (dim,))).reshape(1, dim).astype(dtype),
            "ln_b": (0.05 * jax.random.normal(ks[13], (dim,))).reshape(1, dim).astype(dtype),
            "w1_t": w1.T.astype(dtype),                  # (dim, mlp_dim)
            "b1": b1.reshape(1, mlp_dim).astype(dtype),
            "w2_t": w2.T.astype(dtype),                  # (mlp_dim, dim)
            "b2": b2.reshape(1, dim).astype(dtype),
            "ls": jnp.full((1, dim), init_eps, dtype),
        }
        layers.append((attn_p, ffn_p))
    return layers


# ----------------------------------------------------------------------------
# Pure-JAX reference (same params, same math) for the correctness check.
# ----------------------------------------------------------------------------
def _layernorm_ref(x, g, b):
    mu = jnp.mean(x, axis=-1, keepdims=True)
    var = jnp.mean(jnp.square(x - mu), axis=-1, keepdims=True)
    return (x - mu) * jax.lax.rsqrt(var + _LN_EPS) * g.reshape(-1) + b.reshape(-1)


def _attn_ref(x, p):
    B, S, D = x.shape
    heads = p["heads"]
    inner = p["wq_t"].shape[1]
    dh = inner // heads
    xn = _layernorm_ref(x, p["ln_g"], p["ln_b"])
    # NOTE: wq_t already includes the 1/sqrt(dim_head) scale.
    q, k, v = xn @ p["wq_t"], xn @ p["wk_t"], xn @ p["wv_t"]
    split = lambda t: t.reshape(B, S, heads, dh).transpose(0, 2, 1, 3)
    q, k, v = split(q), split(k), split(v)
    dots = jnp.einsum("bhid,bhjd->bhij", q, k)
    dots = jnp.einsum("bhij,hg->bgij", dots, p["mix_pre"])
    attn = jax.nn.softmax(dots, axis=-1)
    attn = jnp.einsum("bhij,hg->bgij", attn, p["mix_post"])
    out = jnp.einsum("bhij,bhjd->bhid", attn, v)
    out = out.transpose(0, 2, 1, 3).reshape(B, S, inner)
    out = out @ p["wo_t"] + p["bo"].reshape(-1)
    return out * p["ls"].reshape(-1) + x


def _ffn_ref(x, p):
    xn = _layernorm_ref(x, p["ln_g"], p["ln_b"])
    h = xn @ p["w1_t"] + p["b1"].reshape(-1)
    h = jax.nn.gelu(h, approximate=False)
    y = h @ p["w2_t"] + p["b2"].reshape(-1)
    return y * p["ls"].reshape(-1) + x


def transformer_ref(x, layers):
    for attn_p, ffn_p in layers:
        x = _attn_ref(x, attn_p)
        x = _ffn_ref(x, ffn_p)
    return x


if __name__ == "__main__":
    batch, seq = 2, 16
    dim, depth, heads, dim_head, mlp_dim = 32, 2, 4, 8, 64

    key = jax.random.PRNGKey(0)
    kx, kp = jax.random.split(key)
    x = jax.random.normal(kx, (batch, seq, dim), jnp.float32)
    layers = init_transformer_params(kp, dim=dim, depth=depth, heads=heads,
                                     dim_head=dim_head, mlp_dim=mlp_dim)

    # Small tiles at these toy shapes so the multi-q-tile / multi-M-tile
    # pipelined grid paths (and the per-batch KV scratch carry) are exercised.
    y = transformer_forward(x, layers, tq=8, tm=8)
    y = jax.block_until_ready(y)

    y_ref = transformer_ref(x, layers)
    assert y.shape == (batch, seq, dim)
    max_err = float(jnp.max(jnp.abs(y - y_ref)))
    assert jnp.allclose(y, y_ref, atol=2e-3, rtol=2e-3), \
        f"mismatch vs reference (max abs err {max_err})"

    print("KERNEL_OK")
</pallas_src>

<mosaic_0001>
module attributes {stable_mosaic.version = 11 : i64} {
  func.func @_attn_block_kernel(%arg0: i32, %arg1: i32, %arg2: memref<1x16x32xf32, #tpu.memory_space<vmem>>, %arg3: memref<1x32xf32, #tpu.memory_space<vmem>>, %arg4: memref<1x32xf32, #tpu.memory_space<vmem>>, %arg5: memref<32x32xf32, #tpu.memory_space<vmem>>, %arg6: memref<32x32xf32, #tpu.memory_space<vmem>>, %arg7: memref<32x32xf32, #tpu.memory_space<vmem>>, %arg8: memref<4x32xf32, #tpu.memory_space<vmem>>, %arg9: memref<4x4xf32, #tpu.memory_space<smem>>, %arg10: memref<32x32xf32, #tpu.memory_space<vmem>>, %arg11: memref<1x32xf32, #tpu.memory_space<vmem>>, %arg12: memref<1x32xf32, #tpu.memory_space<vmem>>, %arg13: memref<1x8x32xf32, #tpu.memory_space<vmem>>, %arg14: memref<16x32xf32, #tpu.memory_space<vmem>>, %arg15: memref<16x32xf32, #tpu.memory_space<vmem>>, %arg16: memref<4x16x8xf32, #tpu.memory_space<vmem>>) attributes {dimension_semantics = [#tpu.dimension_semantics<parallel>, #tpu.dimension_semantics<arbitrary>], iteration_bounds = array<i64: 2, 2>, scalar_prefetch = 0 : i64, scratch_operands = 3 : i64, tpu.core_type = #tpu.core_type<tc>, window_params = [{transform_indices = @transform_0, window_bounds = array<i64: 1, 16, 32>}, {pipeline_mode = #tpu.pipeline_mode<synchronous>, transform_indices = @transform_1, window_bounds = array<i64: 1, 32>}, {pipeline_mode = #tpu.pipeline_mode<synchronous>, transform_indices = @transform_2, window_bounds = array<i64: 1, 32>}, {pipeline_mode = #tpu.pipeline_mode<synchronous>, transform_indices = @transform_3, window_bounds = array<i64: 32, 32>}, {pipeline_mode = #tpu.pipeline_mode<synchronous>, transform_indices = @transform_4, window_bounds = array<i64: 32, 32>}, {pipeline_mode = #tpu.pipeline_mode<synchronous>, transform_indices = @transform_5, window_bounds = array<i64: 32, 32>}, {pipeline_mode = #tpu.pipeline_mode<synchronous>, transform_indices = @transform_6, window_bounds = array<i64: 4, 32>}, {transform_indices = @transform_7, window_bounds = array<i64: 4, 4>}, {pipeline_mode = #tpu.pipeline_mode<synchronous>, transform_indices = @transform_8, window_bounds = array<i64: 32, 32>}, {pipeline_mode = #tpu.pipeline_mode<synchronous>, transform_indices = @transform_9, window_bounds = array<i64: 1, 32>}, {pipeline_mode = #tpu.pipeline_mode<synchronous>, transform_indices = @transform_10, window_bounds = array<i64: 1, 32>}, {transform_indices = @transform_11, window_bounds = array<i64: 1, 8, 32>}]} {
    %c0_i32 = arith.constant 0 : i32
    %0 = arith.cmpi eq, %arg1, %c0_i32 : i32
    %1 = arith.extui %0 : i1 to i32
    %c0_i32_0 = arith.constant 0 : i32
    %2 = arith.cmpi ne, %1, %c0_i32_0 : i32
    scf.if %2 {
      %c0_55 = arith.constant 0 : index
      %c0_56 = arith.constant 0 : index
      %c0_57 = arith.constant 0 : index
      %129 = vector.load %arg2[%c0_55, %c0_56, %c0_57] : memref<1x16x32xf32, #tpu.memory_space<vmem>>, vector<1x16x32xf32>
      %130 = vector.shape_cast %129 : vector<1x16x32xf32> to vector<16x32xf32>
      %c0_58 = arith.constant 0 : index
      %c0_59 = arith.constant 0 : index
      %131 = vector.load %arg3[%c0_58, %c0_59] : memref<1x32xf32, #tpu.memory_space<vmem>>, vector<1x32xf32>
      %c0_60 = arith.constant 0 : index
      %c0_61 = arith.constant 0 : index
      %132 = vector.load %arg4[%c0_60, %c0_61] : memref<1x32xf32, #tpu.memory_space<vmem>>, vector<1x32xf32>
      %cst_62 = arith.constant dense<0.000000e+00> : vector<16xf32>
      %133 = vector.multi_reduction <add>, %130, %cst_62 [1] : vector<16x32xf32> to vector<16xf32>
      %134 = vector.shape_cast %133 : vector<16xf32> to vector<16x1xf32>
      %cst_63 = arith.constant 3.200000e+01 : f32
      %135 = vector.broadcast %cst_63 : f32 to vector<16x1xf32>
      %136 = arith.divf %134, %135 : vector<16x1xf32>
      %137 = vector.broadcast %136 : vector<16x1xf32> to vector<16x32xf32>
      %138 = arith.subf %130, %137 : vector<16x32xf32>
      %139 = arith.mulf %138, %138 : vector<16x32xf32>
      %cst_64 = arith.constant dense<0.000000e+00> : vector<16xf32>
      %140 = vector.multi_reduction <add>, %139, %cst_64 [1] : vector<16x32xf32> to vector<16xf32>
      %141 = vector.shape_cast %140 : vector<16xf32> to vector<16x1xf32>
      %cst_65 = arith.constant 3.200000e+01 : f32
      %142 = vector.broadcast %cst_65 : f32 to vector<16x1xf32>
      %143 = arith.divf %141, %142 : vector<16x1xf32>
      %cst_66 = arith.constant 9.99999974E-6 : f32
      %144 = vector.broadcast %cst_66 : f32 to vector<16x1xf32>
      %145 = arith.addf %143, %144 : vector<16x1xf32>
      %146 = math.rsqrt %145 : vector<16x1xf32>
      %147 = vector.broadcast %146 : vector<16x1xf32> to vector<16x32xf32>
      %148 = arith.mulf %138, %147 : vector<16x32xf32>
      %149 = vector.broadcast %131 : vector<1x32xf32> to vector<16x32xf32>
      %150 = arith.mulf %148, %149 : vector<16x32xf32>
      %151 = vector.broadcast %132 : vector<1x32xf32> to vector<16x32xf32>
      %152 = arith.addf %150, %151 : vector<16x32xf32>
      %c0_67 = arith.constant 0 : index
      %c0_68 = arith.constant 0 : index
      %153 = vector.load %arg14[%c0_67, %c0_68] : memref<16x32xf32, #tpu.memory_space<vmem>>, vector<16x32xf32>
      tpu.vector_store %arg14[%c0_67, %c0_68], %152 {strides = array<i32>} : memref<16x32xf32, #tpu.memory_space<vmem>>, vector<16x32xf32>,
      %c0_69 = arith.constant 0 : index
      %c0_70 = arith.constant 0 : index
      %154 = vector.load %arg6[%c0_69, %c0_70] : memref<32x32xf32, #tpu.memory_space<vmem>>, vector<32x32xf32>
      %cst_71 = arith.constant dense<0.000000e+00> : vector<16x32xf32>
      %155 = tpu.matmul %152, %154, %cst_71 {dimension_numbers = #tpu.dot_dimension_numbers<[1], [0], [0], [1], [0, 0, 1, 1], [], []>} : vector<16x32xf32>, vector<32x32xf32>, vector<16x32xf32> -> vector<16x32xf32>
      %c0_72 = arith.constant 0 : index
      %c0_73 = arith.constant 0 : index
      %156 = vector.load %arg15[%c0_72, %c0_73] : memref<16x32xf32, #tpu.memory_space<vmem>>, vector<16x32xf32>
      tpu.vector_store %arg15[%c0_72, %c0_73], %155 {strides = array<i32>} : memref<16x32xf32, #tpu.memory_space<vmem>>, vector<16x32xf32>,
      %c0_74 = arith.constant 0 : index
      %c0_75 = arith.constant 0 : index
      %157 = vector.load %arg7[%c0_74, %c0_75] : memref<32x32xf32, #tpu.memory_space<vmem>>, vector<32x32xf32>
      %cst_76 = arith.constant dense<0.000000e+00> : vector<16x32xf32>
      %158 = tpu.matmul %152, %157, %cst_76 {dimension_numbers = #tpu.dot_dimension_numbers<[1], [0], [0], [1], [0, 0, 1, 1], [], []>} : vector<16x32xf32>, vector<32x32xf32>, vector<16x32xf32> -> vector<16x32xf32>
      %159 = vector.extract_strided_slice %158 {offsets = [0, 0], sizes = [16, 8], strides = [1, 1]} : vector<16x32xf32> to vector<16x8xf32>
      %c0_77 = arith.constant 0 : index
      %c0_78 = arith.constant 0 : index
      %c0_79 = arith.constant 0 : index
      %160 = vector.load %arg16[%c0_77, %c0_78, %c0_79] : memref<4x16x8xf32, #tpu.memory_space<vmem>>, vector<1x16x8xf32>
      %161 = vector.shape_cast %160 : vector<1x16x8xf32> to vector<16x8xf32>
      %162 = vector.shape_cast %159 : vector<16x8xf32> to vector<1x16x8xf32>
      tpu.vector_store %arg16[%c0_77, %c0_78, %c0_79], %162 {strides = array<i32>} : memref<4x16x8xf32, #tpu.memory_space<vmem>>, vector<1x16x8xf32>,
      %163 = vector.extract_strided_slice %158 {offsets = [0, 8], sizes = [16, 8], strides = [1, 1]} : vector<16x32xf32> to vector<16x8xf32>
      %c1_80 = arith.constant 1 : index
      %c0_81 = arith.constant 0 : index
      %c0_82 = arith.constant 0 : index
      %164 = vector.load %arg16[%c1_80, %c0_81, %c0_82] : memref<4x16x8xf32, #tpu.memory_space<vmem>>, vector<1x16x8xf32>
      %165 = vector.shape_cast %164 : vector<1x16x8xf32> to vector<16x8xf32>
      %166 = vector.shape_cast %163 : vector<16x8xf32> to vector<1x16x8xf32>
      tpu.vector_store %arg16[%c1_80, %c0_81, %c0_82], %166 {strides = array<i32>} : memref<4x16x8xf32, #tpu.memory_space<vmem>>, vector<1x16x8xf32>,
      %167 = vector.extract_strided_slice %158 {offsets = [0, 16], sizes = [16, 8], strides = [1, 1]} : vector<16x32xf32> to vector<16x8xf32>
      %c2_83 = arith.constant 2 : index
      %c0_84 = arith.constant 0 : index
      %c0_85 = arith.constant 0 : index
      %168 = vector.load %arg16[%c2_83, %c0_84, %c0_85] : memref<4x16x8xf32, #tpu.memory_space<vmem>>, vector<1x16x8xf32>
      %169 = vector.shape_cast %168 : vector<1x16x8xf32> to vector<16x8xf32>
      %170 = vector.shape_cast %167 : vector<16x8xf32> to vector<1x16x8xf32>
      tpu.vector_store %arg16[%c2_83, %c0_84, %c0_85], %170 {strides = array<i32>} : memref<4x16x8xf32, #tpu.memory_space<vmem>>, vector<1x16x8xf32>,
      %171 = vector.extract_strided_slice %158 {offsets = [0, 24], sizes = [16, 8], strides = [1, 1]} : vector<16x32xf32> to vector<16x8xf32>
      %c3_86 = arith.constant 3 : index
      %c0_87 = arith.constant 0 : index
      %c0_88 = arith.constant 0 : index
      %172 = vector.load %arg16[%c3_86, %c0_87, %c0_88] : memref<4x16x8xf32, #tpu.memory_space<vmem>>, vector<1x16x8xf32>
      %173 = vector.shape_cast %172 : vector<1x16x8xf32> to vector<16x8xf32>
      %174 = vector.shape_cast %171 : vector<16x8xf32> to vector<1x16x8xf32>
      tpu.vector_store %arg16[%c3_86, %c0_87, %c0_88], %174 {strides = array<i32>} : memref<4x16x8xf32, #tpu.memory_space<vmem>>, vector<1x16x8xf32>,
    } else {
    }
    %c8_i32 = arith.constant 8 : i32
    %3 = arith.muli %arg1, %c8_i32 : i32
    %4 = tpu.assume_multiple %3, 8 : i32
    %5 = arith.index_cast %4 : i32 to index
    %c0 = arith.constant 0 : index
    %6 = vector.load %arg14[%5, %c0] : memref<16x32xf32, #tpu.memory_space<vmem>>, vector<8x32xf32>
    %c0_1 = arith.constant 0 : index
    %c0_2 = arith.constant 0 : index
    %7 = vector.load %arg5[%c0_1, %c0_2] : memref<32x32xf32, #tpu.memory_space<vmem>>, vector<32x32xf32>
    %cst = arith.constant dense<0.000000e+00> : vector<8x32xf32>
    %8 = tpu.matmul %6, %7, %cst {dimension_numbers = #tpu.dot_dimension_numbers<[1], [0], [0], [1], [0, 0, 1, 1], [], []>} : vector<8x32xf32>, vector<32x32xf32>, vector<8x32xf32> -> vector<8x32xf32>
    %c0_3 = arith.constant 0 : index
    %c0_4 = arith.constant 0 : index
    %9 = vector.load %arg8[%c0_3, %c0_4] : memref<4x32xf32, #tpu.memory_space<vmem>>, vector<4x32xf32>
    %10 = vector.extract_strided_slice %9 {offsets = [0, 0], sizes = [1, 32], strides = [1, 1]} : vector<4x32xf32> to vector<1x32xf32>
    %11 = vector.broadcast %10 : vector<1x32xf32> to vector<8x32xf32>
    %12 = arith.mulf %8, %11 : vector<8x32xf32>
    %13 = vector.extract_strided_slice %9 {offsets = [1, 0], sizes = [1, 32], strides = [1, 1]} : vector<4x32xf32> to vector<1x32xf32>
    %14 = vector.broadcast %13 : vector<1x32xf32> to vector<8x32xf32>
    %15 = arith.mulf %8, %14 : vector<8x32xf32>
    %16 = vector.extract_strided_slice %9 {offsets = [2, 0], sizes = [1, 32], strides = [1, 1]} : vector<4x32xf32> to vector<1x32xf32>
    %17 = vector.broadcast %16 : vector<1x32xf32> to vector<8x32xf32>
    %18 = arith.mulf %8, %17 : vector<8x32xf32>
    %19 = vector.extract_strided_slice %9 {offsets = [3, 0], sizes = [1, 32], strides = [1, 1]} : vector<4x32xf32> to vector<1x32xf32>
    %20 = vector.broadcast %19 : vector<1x32xf32> to vector<8x32xf32>
    %21 = arith.mulf %8, %20 : vector<8x32xf32>
    %22 = tpu.concatenate %12, %15, %18, %21 in 0 : vector<8x32xf32>, vector<8x32xf32>, vector<8x32xf32>, vector<8x32xf32> -> vector<32x32xf32>
    %c0_5 = arith.constant 0 : index
    %c0_6 = arith.constant 0 : index
    %23 = vector.load %arg15[%c0_5, %c0_6] : memref<16x32xf32, #tpu.memory_space<vmem>>, vector<16x32xf32>
    %cst_7 = arith.constant dense<0.000000e+00> : vector<32x16xf32>
    %24 = tpu.matmul %22, %23, %cst_7 {dimension_numbers = #tpu.dot_dimension_numbers<[1], [1], [0], [0], [0, 0, 1, 0], [], []>} : vector<32x32xf32>, vector<16x32xf32>, vector<32x16xf32> -> vector<32x16xf32>
    %cst_8 = arith.constant dense<0xFF800000> : vector<32xf32>
    %25 = vector.multi_reduction <maximumf>, %24, %cst_8 [1] : vector<32x16xf32> to vector<32xf32>
    %26 = vector.shape_cast %25 : vector<32xf32> to vector<32x1xf32>
    %27 = vector.broadcast %26 : vector<32x1xf32> to vector<32x16xf32>
    %28 = arith.subf %24, %27 : vector<32x16xf32>
    %29 = math.exp %28 : vector<32x16xf32>
    %cst_9 = arith.constant dense<0.000000e+00> : vector<32xf32>
    %30 = vector.multi_reduction <add>, %29, %cst_9 [1] : vector<32x16xf32> to vector<32xf32>
    %31 = vector.shape_cast %30 : vector<32xf32> to vector<32x1xf32>
    %32 = vector.broadcast %31 : vector<32x1xf32> to vector<32x16xf32>
    %33 = arith.divf %29, %32 : vector<32x16xf32>
    %34 = vector.extract_strided_slice %33 {offsets = [0, 0], sizes = [8, 16], strides = [1, 1]} : vector<32x16xf32> to vector<8x16xf32>
    %35 = vector.extract_strided_slice %33 {offsets = [8, 0], sizes = [8, 16], strides = [1, 1]} : vector<32x16xf32> to vector<8x16xf32>
    %36 = vector.extract_strided_slice %33 {offsets = [16, 0], sizes = [8, 16], strides = [1, 1]} : vector<32x16xf32> to vector<8x16xf32>
    %37 = vector.extract_strided_slice %33 {offsets = [24, 0], sizes = [8, 16], strides = [1, 1]} : vector<32x16xf32> to vector<8x16xf32>
    %c0_10 = arith.constant 0 : index
    %c0_11 = arith.constant 0 : index
    %38 = memref.load %arg9[%c0_10, %c0_11] : memref<4x4xf32, #tpu.memory_space<smem>>
    %39 = vector.broadcast %38 : f32 to vector<8x16xf32>
    %40 = arith.mulf %34, %39 : vector<8x16xf32>
    %c1 = arith.constant 1 : index
    %c0_12 = arith.constant 0 : index
    %41 = memref.load %arg9[%c1, %c0_12] : memref<4x4xf32, #tpu.memory_space<smem>>
    %42 = vector.broadcast %41 : f32 to vector<8x16xf32>
    %43 = arith.mulf %35, %42 : vector<8x16xf32>
    %44 = arith.addf %40, %43 : vector<8x16xf32>
    %c2 = arith.constant 2 : index
    %c0_13 = arith.constant 0 : index
    %45 = memref.load %arg9[%c2, %c0_13] : memref<4x4xf32, #tpu.memory_space<smem>>
    %46 = vector.broadcast %45 : f32 to vector<8x16xf32>
    %47 = arith.mulf %36, %46 : vector<8x16xf32>
    %48 = arith.addf %44, %47 : vector<8x16xf32>
    %c3 = arith.constant 3 : index
    %c0_14 = arith.constant 0 : index
    %49 = memref.load %arg9[%c3, %c0_14] : memref<4x4xf32, #tpu.memory_space<smem>>
    %50 = vector.broadcast %49 : f32 to vector<8x16xf32>
    %51 = arith.mulf %37, %50 : vector<8x16xf32>
    %52 = arith.addf %48, %51 : vector<8x16xf32>
    %c0_15 = arith.constant 0 : index
    %c1_16 = arith.constant 1 : index
    %53 = memref.load %arg9[%c0_15, %c1_16] : memref<4x4xf32, #tpu.memory_space<smem>>
    %54 = vector.broadcast %53 : f32 to vector<8x16xf32>
    %55 = arith.mulf %34, %54 : vector<8x16xf32>
    %c1_17 = arith.constant 1 : index
    %c1_18 = arith.constant 1 : index
    %56 = memref.load %arg9[%c1_17, %c1_18] : memref<4x4xf32, #tpu.memory_space<smem>>
    %57 = vector.broadcast %56 : f32 to vector<8x16xf32>
    %58 = arith.mulf %35, %57 : vector<8x16xf32>
    %59 = arith.addf %55, %58 : vector<8x16xf32>
    %c2_19 = arith.constant 2 : index
    %c1_20 = arith.constant 1 : index
    %60 = memref.load %arg9[%c2_19, %c1_20] : memref<4x4xf32, #tpu.memory_space<smem>>
    %61 = vector.broadcast %60 : f32 to vector<8x16xf32>
    %62 = arith.mulf %36, %61 : vector<8x16xf32>
    %63 = arith.addf %59, %62 : vector<8x16xf32>
    %c3_21 = arith.constant 3 : index
    %c1_22 = arith.constant 1 : index
    %64 = memref.load %arg9[%c3_21, %c1_22] : memref<4x4xf32, #tpu.memory_space<smem>>
    %65 = vector.broadcast %64 : f32 to vector<8x16xf32>
    %66 = arith.mulf %37, %65 : vector<8x16xf32>
    %67 = arith.addf %63, %66 : vector<8x16xf32>
    %c0_23 = arith.constant 0 : index
    %c2_24 = arith.constant 2 : index
    %68 = memref.load %arg9[%c0_23, %c2_24] : memref<4x4xf32, #tpu.memory_space<smem>>
    %69 = vector.broadcast %68 : f32 to vector<8x16xf32>
    %70 = arith.mulf %34, %69 : vector<8x16xf32>
    %c1_25 = arith.constant 1 : index
    %c2_26 = arith.constant 2 : index
    %71 = memref.load %arg9[%c1_25, %c2_26] : memref<4x4xf32, #tpu.memory_space<smem>>
    %72 = vector.broadcast %71 : f32 to vector<8x16xf32>
    %73 = arith.mulf %35, %72 : vector<8x16xf32>
    %74 = arith.addf %70, %73 : vector<8x16xf32>
    %c2_27 = arith.constant 2 : index
    %c2_28 = arith.constant 2 : index
    %75 = memref.load %arg9[%c2_27, %c2_28] : memref<4x4xf32, #tpu.memory_space<smem>>
    %76 = vector.broadcast %75 : f32 to vector<8x16xf32>
    %77 = arith.mulf %36, %76 : vector<8x16xf32>
    %78 = arith.addf %74, %77 : vector<8x16xf32>
    %c3_29 = arith.constant 3 : index
    %c2_30 = arith.constant 2 : index
    %79 = memref.load %arg9[%c3_29, %c2_30] : memref<4x4xf32, #tpu.memory_space<smem>>
    %80 = vector.broadcast %79 : f32 to vector<8x16xf32>
    %81 = arith.mulf %37, %80 : vector<8x16xf32>
    %82 = arith.addf %78, %81 : vector<8x16xf32>
    %c0_31 = arith.constant 0 : index
    %c3_32 = arith.constant 3 : index
    %83 = memref.load %arg9[%c0_31, %c3_32] : memref<4x4xf32, #tpu.memory_space<smem>>
    %84 = vector.broadcast %83 : f32 to vector<8x16xf32>
    %85 = arith.mulf %34, %84 : vector<8x16xf32>
    %c1_33 = arith.constant 1 : index
    %c3_34 = arith.constant 3 : index
    %86 = memref.load %arg9[%c1_33, %c3_34] : memref<4x4xf32, #tpu.memory_space<smem>>
    %87 = vector.broadcast %86 : f32 to vector<8x16xf32>
    %88 = arith.mulf %35, %87 : vector<8x16xf32>
    %89 = arith.addf %85, %88 : vector<8x16xf32>
    %c2_35 = arith.constant 2 : index
    %c3_36 = arith.constant 3 : index
    %90 = memref.load %arg9[%c2_35, %c3_36] : memref<4x4xf32, #tpu.memory_space<smem>>
    %91 = vector.broadcast %90 : f32 to vector<8x16xf32>
    %92 = arith.mulf %36, %91 : vector<8x16xf32>
    %93 = arith.addf %89, %92 : vector<8x16xf32>
    %c3_37 = arith.constant 3 : index
    %c3_38 = arith.constant 3 : index
    %94 = memref.load %arg9[%c3_37, %c3_38] : memref<4x4xf32, #tpu.memory_space<smem>>
    %95 = vector.broadcast %94 : f32 to vector<8x16xf32>
    %96 = arith.mulf %37, %95 : vector<8x16xf32>
    %97 = arith.addf %93, %96 : vector<8x16xf32>
    %98 = vector.shape_cast %52 : vector<8x16xf32> to vector<1x8x16xf32>
    %99 = vector.shape_cast %67 : vector<8x16xf32> to vector<1x8x16xf32>
    %100 = vector.shape_cast %82 : vector<8x16xf32> to vector<1x8x16xf32>
    %101 = vector.shape_cast %97 : vector<8x16xf32> to vector<1x8x16xf32>
    %102 = tpu.concatenate %98, %99, %100, %101 in 0 : vector<1x8x16xf32>, vector<1x8x16xf32>, vector<1x8x16xf32>, vector<1x8x16xf32> -> vector<4x8x16xf32>
    %c0_39 = arith.constant 0 : index
    %c0_40 = arith.constant 0 : index
    %c0_41 = arith.constant 0 : index
    %103 = vector.load %arg16[%c0_39, %c0_40, %c0_41] : memref<4x16x8xf32, #tpu.memory_space<vmem>>, vector<4x16x8xf32>
    %cst_42 = arith.constant dense<0.000000e+00> : vector<4x8x8xf32>
    %104 = tpu.matmul %102, %103, %cst_42 {dimension_numbers = #tpu.dot_dimension_numbers<[2], [1], [1], [2], [0, 0, 0, 1, 1, 2], [0], [0]>} : vector<4x8x16xf32>, vector<4x16x8xf32>, vector<4x8x8xf32> -> vector<4x8x8xf32>
    %105 = vector.extract_strided_slice %104 {offsets = [0, 0, 0], sizes = [1, 8, 8], strides = [1, 1, 1]} : vector<4x8x8xf32> to vector<1x8x8xf32>
    %106 = vector.shape_cast %105 : vector<1x8x8xf32> to vector<8x8xf32>
    %107 = vector.extract_strided_slice %104 {offsets = [1, 0, 0], sizes = [1, 8, 8], strides = [1, 1, 1]} : vector<4x8x8xf32> to vector<1x8x8xf32>
    %108 = vector.shape_cast %107 : vector<1x8x8xf32> to vector<8x8xf32>
    %109 = vector.extract_strided_slice %104 {offsets = [2, 0, 0], sizes = [1, 8, 8], strides = [1, 1, 1]} : vector<4x8x8xf32> to vector<1x8x8xf32>
    %110 = vector.shape_cast %109 : vector<1x8x8xf32> to vector<8x8xf32>
    %111 = vector.extract_strided_slice %104 {offsets = [3, 0, 0], sizes = [1, 8, 8], strides = [1, 1, 1]} : vector<4x8x8xf32> to vector<1x8x8xf32>
    %112 = vector.shape_cast %111 : vector<1x8x8xf32> to vector<8x8xf32>
    %113 = tpu.concatenate %106, %108, %110, %112 in 1 : vector<8x8xf32>, vector<8x8xf32>, vector<8x8xf32>, vector<8x8xf32> -> vector<8x32xf32>
    %c0_43 = arith.constant 0 : index
    %c0_44 = arith.constant 0 : index
    %114 = vector.load %arg10[%c0_43, %c0_44] : memref<32x32xf32, #tpu.memory_space<vmem>>, vector<32x32xf32>
    %cst_45 = arith.constant dense<0.000000e+00> : vector<8x32xf32>
    %115 = tpu.matmul %113, %114, %cst_45 {dimension_numbers = #tpu.dot_dimension_numbers<[1], [0], [0], [1], [0, 0, 1, 1], [], []>} : vector<8x32xf32>, vector<32x32xf32>, vector<8x32xf32> -> vector<8x32xf32>
    %c0_46 = arith.constant 0 : index
    %c0_47 = arith.constant 0 : index
    %116 = vector.load %arg11[%c0_46, %c0_47] : memref<1x32xf32, #tpu.memory_space<vmem>>, vector<1x32xf32>
    %117 = vector.broadcast %116 : vector<1x32xf32> to vector<8x32xf32>
    %118 = arith.addf %115, %117 : vector<8x32xf32>
    %c0_48 = arith.constant 0 : index
    %c0_49 = arith.constant 0 : index
    %119 = vector.load %arg12[%c0_48, %c0_49] : memref<1x32xf32, #tpu.memory_space<vmem>>, vector<1x32xf32>
    %120 = vector.broadcast %119 : vector<1x32xf32> to vector<8x32xf32>
    %121 = arith.mulf %118, %120 : vector<8x32xf32>
    %c0_50 = arith.constant 0 : index
    %122 = arith.index_cast %4 : i32 to index
    %c0_51 = arith.constant 0 : index
    %123 = vector.load %arg2[%c0_50, %122, %c0_51] : memref<1x16x32xf32, #tpu.memory_space<vmem>>, vector<1x8x32xf32>
    %124 = vector.shape_cast %123 : vector<1x8x32xf32> to vector<8x32xf32>
    %125 = arith.addf %121, %124 : vector<8x32xf32>
    %c0_52 = arith.constant 0 : index
    %c0_53 = arith.constant 0 : index
    %c0_54 = arith.constant 0 : index
    %126 = vector.load %arg13[%c0_52, %c0_53, %c0_54] : memref<1x8x32xf32, #tpu.memory_space<vmem>>, vector<1x8x32xf32>
    %127 = vector.shape_cast %126 : vector<1x8x32xf32> to vector<8x32xf32>
    %128 = vector.shape_cast %125 : vector<8x32xf32> to vector<1x8x32xf32>
    tpu.vector_store %arg13[%c0_52, %c0_53, %c0_54], %128 {strides = array<i32>} : memref<1x8x32xf32, #tpu.memory_space<vmem>>, vector<1x8x32xf32>,
    return
  }
  func.func @transform_0(%arg0: i32, %arg1: i32) -> (i32, i32, i32) {
    %c0_i32 = arith.constant 0 : i32
    %c0_i32_0 = arith.constant 0 : i32
    %c0_i32_1 = arith.constant 0 : i32
    return %arg0, %c0_i32, %c0_i32_0 : i32, i32, i32
  }
  func.func @transform_1(%arg0: i32, %arg1: i32) -> (i32, i32) {
    %c0_i32 = arith.constant 0 : i32
    %c0_i32_0 = arith.constant 0 : i32
    %c0_i32_1 = arith.constant 0 : i32
    return %c0_i32, %c0_i32_0 : i32, i32
  }
  func.func @transform_2(%arg0: i32, %arg1: i32) -> (i32, i32) {
    %c0_i32 = arith.constant 0 : i32
    %c0_i32_0 = arith.constant 0 : i32
    %c0_i32_1 = arith.constant 0 : i32
    return %c0_i32, %c0_i32_0 : i32, i32
  }
  func.func @transform_3(%arg0: i32, %arg1: i32) -> (i32, i32) {
    %c0_i32 = arith.constant 0 : i32
    %c0_i32_0 = arith.constant 0 : i32
    %c0_i32_1 = arith.constant 0 : i32
    return %c0_i32, %c0_i32_0 : i32, i32
  }
  func.func @transform_4(%arg0: i32, %arg1: i32) -> (i32, i32) {
    %c0_i32 = arith.constant 0 : i32
    %c0_i32_0 = arith.constant 0 : i32
    %c0_i32_1 = arith.constant 0 : i32
    return %c0_i32, %c0_i32_0 : i32, i32
  }
  func.func @transform_5(%arg0: i32, %arg1: i32) -> (i32, i32) {
    %c0_i32 = arith.constant 0 : i32
    %c0_i32_0 = arith.constant 0 : i32
    %c0_i32_1 = arith.constant 0 : i32
    return %c0_i32, %c0_i32_0 : i32, i32
  }
  func.func @transform_6(%arg0: i32, %arg1: i32) -> (i32, i32) {
    %c0_i32 = arith.constant 0 : i32
    %c0_i32_0 = arith.constant 0 : i32
    %c0_i32_1 = arith.constant 0 : i32
    return %c0_i32, %c0_i32_0 : i32, i32
  }
  func.func @transform_7(%arg0: i32, %arg1: i32) -> (i32, i32) {
    %c0_i32 = arith.constant 0 : i32
    %c0_i32_0 = arith.constant 0 : i32
    %c0_i32_1 = arith.constant 0 : i32
    return %c0_i32, %c0_i32_0 : i32, i32
  }
  func.func @transform_8(%arg0: i32, %arg1: i32) -> (i32, i32) {
    %c0_i32 = arith.constant 0 : i32
    %c0_i32_0 = arith.constant 0 : i32
    %c0_i32_1 = arith.constant 0 : i32
    return %c0_i32, %c0_i32_0 : i32, i32
  }
  func.func @transform_9(%arg0: i32, %arg1: i32) -> (i32, i32) {
    %c0_i32 = arith.constant 0 : i32
    %c0_i32_0 = arith.constant 0 : i32
    %c0_i32_1 = arith.constant 0 : i32
    return %c0_i32, %c0_i32_0 : i32, i32
  }
  func.func @transform_10(%arg0: i32, %arg1: i32) -> (i32, i32) {
    %c0_i32 = arith.constant 0 : i32
    %c0_i32_0 = arith.constant 0 : i32
    %c0_i32_1 = arith.constant 0 : i32
    return %c0_i32, %c0_i32_0 : i32, i32
  }
  func.func @transform_11(%arg0: i32, %arg1: i32) -> (i32, i32, i32) {
    %c0_i32 = arith.constant 0 : i32
    %c0_i32_0 = arith.constant 0 : i32
    return %arg0, %arg1, %c0_i32 : i32, i32, i32
  }
}

</mosaic_0001>

<llo_original>
// kernel: tpu_custom_call.1
$region0: #{tpu_custom_call.1}
  #allocation0 [shape = 'u32[]', space=smem, size = 0x4, offset = 0x4, fixed_abs, tag = 'smem constant byte address 0x4 - core index']
  #allocation1 [shape = 'u32[144,128]{1,0:T(1,128)}', space=vmem, size = 0x12000, scoped, tag = 'internal scratch']
  #allocation2 [shape = 'f32[16,32]{1,0:T(8,128)}', space=vmem, size = 0x2000, scoped, tag = 'scratch operand']
  #allocation3 [shape = 'f32[16,32]{1,0:T(8,128)}', space=vmem, size = 0x2000, scoped, tag = 'scratch operand']
  #allocation4 [shape = 'f32[4,16,8]{2,1,0:T(8,128)}', space=vmem, size = 0x8000, scoped, tag = 'scratch operand']
  %s0 = inlined_call_operand.hbm [shape: f32[2,16,32], index: 0, kind: input, shape index: {}]
  %s1 = inlined_call_operand.vmem [shape: f32[1,32], index: 1, kind: input, shape index: {}]
  %s2 = inlined_call_operand.hbm [shape: f32[1,32], index: 2, kind: input, shape index: {}]
  %s3 = inlined_call_operand.hbm [shape: f32[32,32], index: 3, kind: input, shape index: {}]
  %s4 = inlined_call_operand.hbm [shape: f32[32,32], index: 4, kind: input, shape index: {}]
  %s5 = inlined_call_operand.hbm [shape: f32[32,32], index: 5, kind: input, shape index: {}]
  %s6 = inlined_call_operand.vmem [shape: f32[4,32], index: 6, kind: input, shape index: {}]
  %s7 = inlined_call_operand.vmem [shape: f32[4,4], index: 7, kind: input, shape index: {}]
  %s8 = inlined_call_operand.hbm [shape: f32[32,32], index: 8, kind: input, shape index: {}]
  %s9 = inlined_call_operand.vmem [shape: f32[1,32], index: 9, kind: input, shape index: {}]
  %s10 = inlined_call_operand.vmem [shape: f32[1,32], index: 10, kind: input, shape index: {}]
  %s11 = inlined_call_operand.hbm [shape: f32[2,16,32], index: 11, kind: output, shape index: {}]
  %s12 = sld [smem:[#allocation0]]
  $region109: #{tpu_custom_call.1} parent=0
    _
  %s14 = ssub.s32 1, %s12
  %s15 = scalar_select 0, %s14, %s12
  $region1: #{tpu_custom_call.1} parent=0
    #allocation5 [shape = 'u8[16384]{0}', space=vmem, size = 0x4000, scoped, tag = 'input window, operand 0']
    #allocation6 [shape = 's32[2]{0}', space=sflag, size = 0x8, scoped, tag = 'scoped memory for tpu_custom_call.1']
    #allocation7 [shape = 's32[2]{0}', space=sflag, size = 0x8, scoped, tag = 'scoped memory for tpu_custom_call.1']
    #allocation8 [shape = 's32[2]{0}', space=sflag, size = 0x8, scoped, tag = 'scoped memory for tpu_custom_call.1']
    #allocation9 [shape = 'u8[512]{0}', space=vmem, size = 0x400, scoped, tag = 'input window, operand 2, single buffered']
    #allocation10 [shape = 's32[1]{0}', space=sflag, size = 0x4, scoped, tag = 'scoped memory for tpu_custom_call.1']
    #allocation11 [shape = 'u8[16384]{0}', space=vmem, size = 0x4000, scoped, tag = 'input window, operand 3, single buffered']
    #allocation12 [shape = 'u8[16384]{0}', space=vmem, size = 0x4000, scoped, tag = 'input window, operand 4, single buffered']
    #allocation13 [shape = 's32[1]{0}', space=sflag, size = 0x4, scoped, tag = 'scoped memory for tpu_custom_call.1']
    #allocation14 [shape = 'u8[16384]{0}', space=vmem, size = 0x4000, scoped, tag = 'input window, operand 5, single buffered']
    #allocation15 [shape = 'u8[2048]{0}', space=smem, size = 0x800, scoped, tag = 'input window, operand 7, single buffered']
    #allocation16 [shape = 'u8[16384]{0}', space=vmem, size = 0x4000, scoped, tag = 'input window, operand 8, single buffered']
    #allocation17 [shape = 's32[1]{0}', space=sflag, size = 0x4, scoped, tag = 'scoped memory for tpu_custom_call.1']
    #allocation18 [shape = 'u8[8192]{0}', space=vmem, size = 0x2000, scoped, tag = 'output window, operand 0']
    %16 = vsyncpa [#allocation6], 0
    %s17 = scalar_lea.sflag [#allocation6], 1
    %18 = vsyncpa %s17, 0
    %19 = vsyncpa [#allocation10], 0
    %20 = vsyncpa [#allocation13], 0
    %21 = vsyncpa [#allocation8], 0
    %22 = vsyncpa [#allocation17], 0
    %23 = vsyncpa [#allocation7], 0
    %s24 = scalar_lea.sflag [#allocation7], 1
    %25 = vsyncpa %s24, 0
    loop: start=0, step=1, limit=6
    $region2: #{tpu_custom_call.1} parent=1 // loop_pre_header
      _
    $region3: #{tpu_custom_call.1} parent=1 // loop_header
      %s27 = sphi 0, %s31
      %p28 = scmp.ge.s32.totalorder %s27, 6
      %s34 = sphi 0, %s46
      %s35 = sphi 0, %s42
      %s36 = sphi 0, %s34
      %s37 = sphi 0, %s35
      %s38 = sphi 0, %s36
      %s39 = sphi 0, %s37
      %s49 = sphi 0, %s51
      %s52 = sphi 0, %s49
      %s53 = sphi 0, %s52
      %s69 = sphi 0, %s53
      %s73 = sphi 0, %s73
      %s75 = sphi 0, %s73
      %s76 = sphi 0, %s75
      %s90 = sphi 0, %s76
      %s94 = sphi 0, %s94
      %s96 = sphi 0, %s94
      %s97 = sphi 0, %s96
      %s111 = sphi 0, %s97
      %s115 = sphi 0, %s115
      %s117 = sphi 0, %s115
      %s118 = sphi 0, %s117
      %s132 = sphi 0, %s118
      %s136 = sphi 0, %s136
      %s138 = sphi 0, %s136
      %s139 = sphi 0, %s138
      %s153 = sphi 0, %s139
      %s157 = sphi 0, %s157
      %s159 = sphi 0, %s157
      %s160 = sphi 0, %s159
      %s174 = sphi 0, %s160
      %s178 = sphi 0, %s178
      %s180 = sphi 0, %s178
      %s181 = sphi 0, %s180
      %s195 = sphi 0, %s181
      %s199 = sphi 0, %s199
      %s201 = sphi 0, %s199
      %s202 = sphi 0, %s201
      %s216 = sphi 0, %s202
      %s220 = sphi 0, %s220
      %s222 = sphi 0, %s220
      %s223 = sphi 0, %s222
      %s237 = sphi 0, %s223
      %s241 = sphi 0, %s241
      %s243 = sphi 0, %s241
      %s244 = sphi 0, %s243
      %s258 = sphi 0, %s244
      %s262 = sphi 0, %s262
      %s264 = sphi 0, %s262
      %s265 = sphi 0, %s264
      %s279 = sphi 0, %s265
      %s287 = sphi 0, %s289
      %s290 = sphi 0, %s287
      %s291 = sphi 0, %s290
      %s307 = sphi 0, %s291
    $region4: #{tpu_custom_call.1} parent=1 // loop_header_branch
      %30 = sbr.rel (%p28) target = $region8
    $region5: #{tpu_custom_call.1} parent=1 // loop_body
      %s32 = ssub.s32 %s27, 1
      %s33 = ssub.s32 %s27, 2
      %s40 = sadd.s32 1, %s35
      %p41 = scmp.ge.s32.totalorder %s40, 2
      %s42 = scalar_select %p41, 0, %s40
      %s43 = sadd.s32 1, %s34
      %s44 = scalar_select %p41, %s43, %s34
      %p45 = scmp.ge.s32.totalorder %s44, 2
      %s46 = scalar_select %p45, 0, %s44
      %s47 = ssub.s32 %s34, %s46
      %p48 = scmp.eq.s32.totalorder %s47, 0
      %s50 = sadd.s32 %s49, 1
      %s51 = scalar_select %p48, %s49, %s50
      %p54 = pneg %p48
      %p55 = scmp.eq.s32.totalorder %s27, 3
      %p56 = por %p54, %p55
      %p57 = scmp.ne.s32.totalorder %s49, %s52
      %p58 = scmp.eq.s32.totalorder %s27, 0
      %p59 = por %p57, %p58
      %p60 = scmp.ne.s32.totalorder %s49, %s52
      %p61 = scmp.eq.s32.totalorder %s32, 3
      %p62 = por %p60, %p61
      %p63 = scmp.ne.s32.totalorder %s52, %s53
      %p64 = scmp.eq.s32.totalorder %s32, 0
      %p65 = por %p63, %p64
      %p66 = scmp.ne.s32.totalorder %s52, %s53
      %p67 = scmp.eq.s32.totalorder %s33, 3
      %p68 = por %p66, %p67
      %p70 = scmp.ne.s32.totalorder %s53, %s69
      %p71 = scmp.eq.s32.totalorder %s33, 0
      %p72 = por %p70, %p71
      %s74 = sadd.s32 %s73, 1
      %p77 = scmp.eq.s32.totalorder %s27, 3
      %p78 = scmp.ne.s32.totalorder %s73, %s75
      %p79 = scmp.eq.s32.totalorder %s27, 0
      %p80 = por %p78, %p79
      %p81 = scmp.ne.s32.totalorder %s73, %s75
      %p82 = scmp.eq.s32.totalorder %s32, 3
      %p83 = por %p81, %p82
      %p84 = scmp.ne.s32.totalorder %s75, %s76
      %p85 = scmp.eq.s32.totalorder %s32, 0
      %p86 = por %p84, %p85
      %p87 = scmp.ne.s32.totalorder %s75, %s76
      %p88 = scmp.eq.s32.totalorder %s33, 3
      %p89 = por %p87, %p88
      %p91 = scmp.ne.s32.totalorder %s76, %s90
      %p92 = scmp.eq.s32.totalorder %s33, 0
      %p93 = por %p91, %p92
      %s95 = sadd.s32 %s94, 1
      %p98 = scmp.eq.s32.totalorder %s27, 3
      %p99 = scmp.ne.s32.totalorder %s94, %s96
      %p100 = scmp.eq.s32.totalorder %s27, 0
      %p101 = por %p99, %p100
      %p102 = scmp.ne.s32.totalorder %s94, %s96
      %p103 = scmp.eq.s32.totalorder %s32, 3
      %p104 = por %p102, %p103
      %p105 = scmp.ne.s32.totalorder %s96, %s97
      %p106 = scmp.eq.s32.totalorder %s32, 0
      %p107 = por %p105, %p106
      %p108 = scmp.ne.s32.totalorder %s96, %s97
      %p109 = scmp.eq.s32.totalorder %s33, 3
      %p110 = por %p108, %p109
      %p112 = scmp.ne.s32.totalorder %s97, %s111
      %p113 = scmp.eq.s32.totalorder %s33, 0
      %p114 = por %p112, %p113
      %s116 = sadd.s32 %s115, 1
      %p119 = scmp.eq.s32.totalorder %s27, 3
      %p120 = scmp.ne.s32.totalorder %s115, %s117
      %p121 = scmp.eq.s32.totalorder %s27, 0
      %p122 = por %p120, %p121
      %p123 = scmp.ne.s32.totalorder %s115, %s117
      %p124 = scmp.eq.s32.totalorder %s32, 3
      %p125 = por %p123, %p124
      %p126 = scmp.ne.s32.totalorder %s117, %s118
      %p127 = scmp.eq.s32.totalorder %s32, 0
      %p128 = por %p126, %p127
      %p129 = scmp.ne.s32.totalorder %s117, %s118
      %p130 = scmp.eq.s32.totalorder %s33, 3
      %p131 = por %p129, %p130
      %p133 = scmp.ne.s32.totalorder %s118, %s132
      %p134 = scmp.eq.s32.totalorder %s33, 0
      %p135 = por %p133, %p134
      %s137 = sadd.s32 %s136, 1
      %p140 = scmp.eq.s32.totalorder %s27, 3
      %p141 = scmp.ne.s32.totalorder %s136, %s138
      %p142 = scmp.eq.s32.totalorder %s27, 0
      %p143 = por %p141, %p142
      %p144 = scmp.ne.s32.totalorder %s136, %s138
      %p145 = scmp.eq.s32.totalorder %s32, 3
      %p146 = por %p144, %p145
      %p147 = scmp.ne.s32.totalorder %s138, %s139
      %p148 = scmp.eq.s32.totalorder %s32, 0
      %p149 = por %p147, %p148
      %p150 = scmp.ne.s32.totalorder %s138, %s139
      %p151 = scmp.eq.s32.totalorder %s33, 3
      %p152 = por %p150, %p151
      %p154 = scmp.ne.s32.totalorder %s139, %s153
      %p155 = scmp.eq.s32.totalorder %s33, 0
      %p156 = por %p154, %p155
      %s158 = sadd.s32 %s157, 1
      %p161 = scmp.eq.s32.totalorder %s27, 3
      %p162 = scmp.ne.s32.totalorder %s157, %s159
      %p163 = scmp.eq.s32.totalorder %s27, 0
      %p164 = por %p162, %p163
      %p165 = scmp.ne.s32.totalorder %s157, %s159
      %p166 = scmp.eq.s32.totalorder %s32, 3
      %p167 = por %p165, %p166
      %p168 = scmp.ne.s32.totalorder %s159, %s160
      %p169 = scmp.eq.s32.totalorder %s32, 0
      %p170 = por %p168, %p169
      %p171 = scmp.ne.s32.totalorder %s159, %s160
      %p172 = scmp.eq.s32.totalorder %s33, 3
      %p173 = por %p171, %p172
      %p175 = scmp.ne.s32.totalorder %s160, %s174
      %p176 = scmp.eq.s32.totalorder %s33, 0
      %p177 = por %p175, %p176
      %s179 = sadd.s32 %s178, 1
      %p182 = scmp.eq.s32.totalorder %s27, 3
      %p183 = scmp.ne.s32.totalorder %s178, %s180
      %p184 = scmp.eq.s32.totalorder %s27, 0
      %p185 = por %p183, %p184
      %p186 = scmp.ne.s32.totalorder %s178, %s180
      %p187 = scmp.eq.s32.totalorder %s32, 3
      %p188 = por %p186, %p187
      %p189 = scmp.ne.s32.totalorder %s180, %s181
      %p190 = scmp.eq.s32.totalorder %s32, 0
      %p191 = por %p189, %p190
      %p192 = scmp.ne.s32.totalorder %s180, %s181
      %p193 = scmp.eq.s32.totalorder %s33, 3
      %p194 = por %p192, %p193
      %p196 = scmp.ne.s32.totalorder %s181, %s195
      %p197 = scmp.eq.s32.totalorder %s33, 0
      %p198 = por %p196, %p197
      %s200 = sadd.s32 %s199, 1
      %p203 = scmp.eq.s32.totalorder %s27, 3
      %p204 = scmp.ne.s32.totalorder %s199, %s201
      %p205 = scmp.eq.s32.totalorder %s27, 0
      %p206 = por %p204, %p205
      %p207 = scmp.ne.s32.totalorder %s199, %s201
      %p208 = scmp.eq.s32.totalorder %s32, 3
      %p209 = por %p207, %p208
      %p210 = scmp.ne.s32.totalorder %s201, %s202
      %p211 = scmp.eq.s32.totalorder %s32, 0
      %p212 = por %p210, %p211
      %p213 = scmp.ne.s32.totalorder %s201, %s202
      %p214 = scmp.eq.s32.totalorder %s33, 3
      %p215 = por %p213, %p214
      %p217 = scmp.ne.s32.totalorder %s202, %s216
      %p218 = scmp.eq.s32.totalorder %s33, 0
      %p219 = por %p217, %p218
      %s221 = sadd.s32 %s220, 1
      %p224 = scmp.eq.s32.totalorder %s27, 3
      %p225 = scmp.ne.s32.totalorder %s220, %s222
      %p226 = scmp.eq.s32.totalorder %s27, 0
      %p227 = por %p225, %p226
      %p228 = scmp.ne.s32.totalorder %s220, %s222
      %p229 = scmp.eq.s32.totalorder %s32, 3
      %p230 = por %p228, %p229
      %p231 = scmp.ne.s32.totalorder %s222, %s223
      %p232 = scmp.eq.s32.totalorder %s32, 0
      %p233 = por %p231, %p232
      %p234 = scmp.ne.s32.totalorder %s222, %s223
      %p235 = scmp.eq.s32.totalorder %s33, 3
      %p236 = por %p234, %p235
      %p238 = scmp.ne.s32.totalorder %s223, %s237
      %p239 = scmp.eq.s32.totalorder %s33, 0
      %p240 = por %p238, %p239
      %s242 = sadd.s32 %s241, 1
      %p245 = scmp.eq.s32.totalorder %s27, 3
      %p246 = scmp.ne.s32.totalorder %s241, %s243
      %p247 = scmp.eq.s32.totalorder %s27, 0
      %p248 = por %p246, %p247
      %p249 = scmp.ne.s32.totalorder %s241, %s243
      %p250 = scmp.eq.s32.totalorder %s32, 3
      %p251 = por %p249, %p250
      %p252 = scmp.ne.s32.totalorder %s243, %s244
      %p253 = scmp.eq.s32.totalorder %s32, 0
      %p254 = por %p252, %p253
      %p255 = scmp.ne.s32.totalorder %s243, %s244
      %p256 = scmp.eq.s32.totalorder %s33, 3
      %p257 = por %p255, %p256
      %p259 = scmp.ne.s32.totalorder %s244, %s258
      %p260 = scmp.eq.s32.totalorder %s33, 0
      %p261 = por %p259, %p260
      %s263 = sadd.s32 %s262, 1
      %p266 = scmp.eq.s32.totalorder %s27, 3
      %p267 = scmp.ne.s32.totalorder %s262, %s264
      %p268 = scmp.eq.s32.totalorder %s27, 0
      %p269 = por %p267, %p268
      %p270 = scmp.ne.s32.totalorder %s262, %s264
      %p271 = scmp.eq.s32.totalorder %s32, 3
      %p272 = por %p270, %p271
      %p273 = scmp.ne.s32.totalorder %s264, %s265
      %p274 = scmp.eq.s32.totalorder %s32, 0
      %p275 = por %p273, %p274
      %p276 = scmp.ne.s32.totalorder %s264, %s265
      %p277 = scmp.eq.s32.totalorder %s33, 3
      %p278 = por %p276, %p277
      %p280 = scmp.ne.s32.totalorder %s265, %s279
      %p281 = scmp.eq.s32.totalorder %s33, 0
      %p282 = por %p280, %p281
      %s283 = ssub.s32 %s34, %s46
      %s284 = ssub.s32 %s35, %s42
      %s285 = sor.u32 %s283, %s284
      %p286 = scmp.eq.s32.totalorder %s285, 0
      %s288 = sadd.s32 %s287, 1
      %s289 = scalar_select %p286, %s287, %s288
      %p292 = pneg %p286
      %p293 = scmp.eq.s32.totalorder %s27, 3
      %p294 = por %p292, %p293
      %p295 = scmp.ne.s32.totalorder %s287, %s290
      %p296 = scmp.eq.s32.totalorder %s27, 0
      %p297 = por %p295, %p296
      %p298 = scmp.ne.s32.totalorder %s287, %s290
      %p299 = scmp.eq.s32.totalorder %s32, 3
      %p300 = por %p298, %p299
      %p301 = scmp.ne.s32.totalorder %s290, %s291
      %p302 = scmp.eq.s32.totalorder %s32, 0
      %p303 = por %p301, %p302
      %p304 = scmp.ne.s32.totalorder %s290, %s291
      %p305 = scmp.eq.s32.totalorder %s33, 3
      %p306 = por %p304, %p305
      %p308 = scmp.ne.s32.totalorder %s291, %s307
      %p309 = scmp.eq.s32.totalorder %s33, 0
      %p310 = por %p308, %p309
      %p311 = scmp.le.s32.totalorder 1, %s27
      %p312 = scmp.lt.s32.totalorder %s27, 5
      %p313 = pnand %p311, %p312
      %p314 = pneg %p313
      // Predicated region
      $region9: #{tpu_custom_call.1} parent=5 // pred_check
        _
      $region10: #{tpu_custom_call.1} parent=5 // pred_check_branch
        %316 = sbr.rel (%p313) target = $region12
      $region11: #{tpu_custom_call.1} parent=5 // pred_region
        %s317 = ssub.s32 %s27, 1
        // Predicated region
        $region13: #{tpu_custom_call.1} parent=11 // pred_check
          %p318 = pneg %p86
        $region14: #{tpu_custom_call.1} parent=11 // pred_check_branch
          %320 = sbr.rel (%p318) target = $region16
        $region15: #{tpu_custom_call.1} parent=11 // pred_region
          _
        $region16: #{tpu_custom_call.1} parent=11 // pred_fallthru
          _
        // Predicated region
        $region17: #{tpu_custom_call.1} parent=11 // pred_check
          %p321 = pneg %p107
        $region18: #{tpu_custom_call.1} parent=11 // pred_check_branch
          %323 = sbr.rel (%p321) target = $region20
        $region19: #{tpu_custom_call.1} parent=11 // pred_region
          %s325 = ssub.s32 16, 16
          %326 = vsyncadd [#allocation10], %s325
          %s328 = sshll.u32 [#allocation9], 4
          %s329 = int_to_ptr.vmem [resolvable:$true] %s328
          %331 = dma.hbm_to_vmem [thread:$0]  %s2, 16, %s329, [#allocation10]
        $region20: #{tpu_custom_call.1} parent=11 // pred_fallthru
          _
        // Predicated region
        $region21: #{tpu_custom_call.1} parent=11 // pred_check
          %p332 = pneg %p128
        $region22: #{tpu_custom_call.1} parent=11 // pred_check_branch
          %334 = sbr.rel (%p332) target = $region24
        $region23: #{tpu_custom_call.1} parent=11 // pred_region
          %s336 = ssub.s32 512, 512
          %337 = vsyncadd [#allocation10], %s336
          %s338 = sshll.u32 [#allocation11], 4
          %s339 = int_to_ptr.vmem [resolvable:$true] %s338
          %344 = dma.hbm_to_vmem [thread:$0]  %s3, 512, %s339, [#allocation10], 128, 128, 8
        $region24: #{tpu_custom_call.1} parent=11 // pred_fallthru
          _
        // Predicated region
        $region25: #{tpu_custom_call.1} parent=11 // pred_check
          %p345 = pneg %p149
        $region26: #{tpu_custom_call.1} parent=11 // pred_check_branch
          %347 = sbr.rel (%p345) target = $region28
        $region27: #{tpu_custom_call.1} parent=11 // pred_region
          %s349 = ssub.s32 512, 512
          %350 = vsyncadd [#allocation13], %s349
          %s351 = sshll.u32 [#allocation12], 4
          %s352 = int_to_ptr.vmem [resolvable:$true] %s351
          %357 = dma.hbm_to_vmem [thread:$0]  %s4, 512, %s352, [#allocation13], 128, 128, 8
        $region28: #{tpu_custom_call.1} parent=11 // pred_fallthru
          _
        // Predicated region
        $region29: #{tpu_custom_call.1} parent=11 // pred_check
          %p358 = pneg %p170
        $region30: #{tpu_custom_call.1} parent=11 // pred_check_branch
          %360 = sbr.rel (%p358) target = $region32
        $region31: #{tpu_custom_call.1} parent=11 // pred_region
          %s362 = ssub.s32 512, 512
          %363 = vsyncadd [#allocation13], %s362
          %s364 = sshll.u32 [#allocation14], 4
          %s365 = int_to_ptr.vmem [resolvable:$true] %s364
          %370 = dma.hbm_to_vmem [thread:$0]  %s5, 512, %s365, [#allocation13], 128, 128, 8
        $region32: #{tpu_custom_call.1} parent=11 // pred_fallthru
          _
        // Predicated region
        $region33: #{tpu_custom_call.1} parent=11 // pred_check
          %p371 = pneg %p191
        $region34: #{tpu_custom_call.1} parent=11 // pred_check_branch
          %373 = sbr.rel (%p371) target = $region36
        $region35: #{tpu_custom_call.1} parent=11 // pred_region
          _
        $region36: #{tpu_custom_call.1} parent=11 // pred_fallthru
          _
        // Predicated region
        $region37: #{tpu_custom_call.1} parent=11 // pred_check
          %p374 = pneg %p212
        $region38: #{tpu_custom_call.1} parent=11 // pred_check_branch
          %376 = sbr.rel (%p374) target = $region40
        $region39: #{tpu_custom_call.1} parent=11 // pred_region
          %s378 = ssub.s32 64, 64
          %379 = vsyncadd [#allocation8], %s378
          %s381 = sshll.u32 %s7, 4
          %s382 = int_to_ptr.vmem [resolvable:$true] %s381
          %384 = dma.vmem_to_smem %s382, 64, [#allocation15], [#allocation8]
        $region40: #{tpu_custom_call.1} parent=11 // pred_fallthru
          _
        // Predicated region
        $region41: #{tpu_custom_call.1} parent=11 // pred_check
          %p385 = pneg %p233
        $region42: #{tpu_custom_call.1} parent=11 // pred_check_branch
          %387 = sbr.rel (%p385) target = $region44
        $region43: #{tpu_custom_call.1} parent=11 // pred_region
          %s389 = ssub.s32 512, 512
          %390 = vsyncadd [#allocation17], %s389
          %s391 = sshll.u32 [#allocation16], 4
          %s392 = int_to_ptr.vmem [resolvable:$true] %s391
          %397 = dma.hbm_to_vmem [thread:$0]  %s8, 512, %s392, [#allocation17], 128, 128, 8
        $region44: #{tpu_custom_call.1} parent=11 // pred_fallthru
          _
        // Predicated region
        $region45: #{tpu_custom_call.1} parent=11 // pred_check
          %p398 = pneg %p254
        $region46: #{tpu_custom_call.1} parent=11 // pred_check_branch
          %400 = sbr.rel (%p398) target = $region48
        $region47: #{tpu_custom_call.1} parent=11 // pred_region
          _
        $region48: #{tpu_custom_call.1} parent=11 // pred_fallthru
          _
        // Predicated region
        $region49: #{tpu_custom_call.1} parent=11 // pred_check
          %p401 = pneg %p275
        $region50: #{tpu_custom_call.1} parent=11 // pred_check_branch
          %403 = sbr.rel (%p401) target = $region52
        $region51: #{tpu_custom_call.1} parent=11 // pred_region
          _
        $region52: #{tpu_custom_call.1} parent=11 // pred_fallthru
          _
      $region12: #{tpu_custom_call.1} parent=5 // pred_fallthru
        _
      %p404 = scmp.lt.s32.totalorder %s27, 4
      // Predicated region
      $region53: #{tpu_custom_call.1} parent=5 // pred_check
        %p405 = pneg %p404
      $region54: #{tpu_custom_call.1} parent=5 // pred_check_branch
        %407 = sbr.rel (%p405) target = $region56
      $region55: #{tpu_custom_call.1} parent=5 // pred_region
        // Predicated region
        $region57: #{tpu_custom_call.1} parent=55 // pred_check
          %p408 = pneg %p59
        $region58: #{tpu_custom_call.1} parent=55 // pred_check_branch
          %410 = sbr.rel (%p408) target = $region60
        $region59: #{tpu_custom_call.1} parent=55 // pred_region
          %s411 = sand.u32 %s49, 1
          %s412 = scalar_lea.sflag [#allocation6], %s411
          %s413 = sand.u32 %s49, 1
          %s414 = smul.addr %s413, 16
          %s415 = scalar_lea.vmem [#allocation5], %s414
          %s417 = ssub.s32 256, 256
          %418 = vsyncadd %s412, %s417
          %s419 = smul.addr %s34, 2
          %s420 = smul.addr %s419, 128
          %s421 = scalar_lea.hbm %s0, %s420
          %s422 = sshll.u32 %s415, 4
          %s423 = int_to_ptr.vmem [resolvable:$true] %s422
          %428 = dma.hbm_to_vmem [thread:$0]  %s421, 256, %s423, %s412, 128, 128, 8
        $region60: #{tpu_custom_call.1} parent=55 // pred_fallthru
          _
      $region56: #{tpu_custom_call.1} parent=5 // pred_fallthru
        _
      %p429 = scmp.le.s32.totalorder 1, %s27
      %p430 = scmp.lt.s32.totalorder %s27, 5
      %p431 = pnand %p429, %p430
      %p432 = pneg %p431
      // Predicated region
      $region61: #{tpu_custom_call.1} parent=5 // pred_check
        _
      $region62: #{tpu_custom_call.1} parent=5 // pred_check_branch
        %434 = sbr.rel (%p431) target = $region64
      $region63: #{tpu_custom_call.1} parent=5 // pred_region
        %s435 = ssub.s32 %s27, 1
        %s436 = sand.u32 %s52, 1
        %s437 = scalar_lea.sflag [#allocation6], %s436
        %s438 = sand.u32 %s52, 1
        %s439 = smul.addr %s438, 16
        %s440 = scalar_lea.vmem [#allocation5], %s439
        // Predicated region
        $region65: #{tpu_custom_call.1} parent=63 // pred_check
          %p441 = pneg %p65
        $region66: #{tpu_custom_call.1} parent=63 // pred_check_branch
          %443 = sbr.rel (%p441) target = $region68
        $region67: #{tpu_custom_call.1} parent=63 // pred_region
          %444 = dma.done %s437, 256
        $region68: #{tpu_custom_call.1} parent=63 // pred_fallthru
          _
        // Predicated region
        $region69: #{tpu_custom_call.1} parent=63 // pred_check
          %p445 = pneg %p107
        $region70: #{tpu_custom_call.1} parent=63 // pred_check_branch
          %447 = sbr.rel (%p445) target = $region72
        $region71: #{tpu_custom_call.1} parent=63 // pred_region
          %448 = dma.done [#allocation10], 16
        $region72: #{tpu_custom_call.1} parent=63 // pred_fallthru
          _
        // Predicated region
        $region73: #{tpu_custom_call.1} parent=63 // pred_check
          %p449 = pneg %p128
        $region74: #{tpu_custom_call.1} parent=63 // pred_check_branch
          %451 = sbr.rel (%p449) target = $region76
        $region75: #{tpu_custom_call.1} parent=63 // pred_region
          %452 = dma.done [#allocation10], 512
        $region76: #{tpu_custom_call.1} parent=63 // pred_fallthru
          _
        // Predicated region
        $region77: #{tpu_custom_call.1} parent=63 // pred_check
          %p453 = pneg %p149
        $region78: #{tpu_custom_call.1} parent=63 // pred_check_branch
          %455 = sbr.rel (%p453) target = $region80
        $region79: #{tpu_custom_call.1} parent=63 // pred_region
          %456 = dma.done [#allocation13], 512
        $region80: #{tpu_custom_call.1} parent=63 // pred_fallthru
          _
        // Predicated region
        $region81: #{tpu_custom_call.1} parent=63 // pred_check
          %p457 = pneg %p170
        $region82: #{tpu_custom_call.1} parent=63 // pred_check_branch
          %459 = sbr.rel (%p457) target = $region84
        $region83: #{tpu_custom_call.1} parent=63 // pred_region
          %460 = dma.done [#allocation13], 512
        $region84: #{tpu_custom_call.1} parent=63 // pred_fallthru
          _
        // Predicated region
        $region85: #{tpu_custom_call.1} parent=63 // pred_check
          %p461 = pneg %p212
        $region86: #{tpu_custom_call.1} parent=63 // pred_check_branch
          %463 = sbr.rel (%p461) target = $region88
        $region87: #{tpu_custom_call.1} parent=63 // pred_region
          %464 = dma.done [#allocation8], 64
        $region88: #{tpu_custom_call.1} parent=63 // pred_fallthru
          _
        // Predicated region
        $region89: #{tpu_custom_call.1} parent=63 // pred_check
          %p465 = pneg %p233
        $region90: #{tpu_custom_call.1} parent=63 // pred_check_branch
          %467 = sbr.rel (%p465) target = $region92
        $region91: #{tpu_custom_call.1} parent=63 // pred_region
          %468 = dma.done [#allocation17], 512
        $region92: #{tpu_custom_call.1} parent=63 // pred_fallthru
          _
        %469 = sfence
        %s470 = sand.u32 %s52, 1
        %s471 = scalar_lea.sflag [#allocation6], %s470
        %s472 = sand.u32 %s52, 1
        %s473 = smul.addr %s472, 16
        %s474 = scalar_lea.vmem [#allocation5], %s473
        %p475 = pneg %p65
        %p476 = pneg %p62
        %p477 = pneg %p86
        %p478 = pneg %p83
        %p479 = pneg %p107
        %p480 = pneg %p104
        %p481 = pneg %p128
        %p482 = pneg %p125
        %p483 = pneg %p149
        %p484 = pneg %p146
        %p485 = pneg %p170
        %p486 = pneg %p167
        %p487 = pneg %p191
        %p488 = pneg %p188
        %p489 = pneg %p212
        %p490 = pneg %p209
        %p491 = pneg %p233
        %p492 = pneg %p230
        %p493 = pneg %p254
        %p494 = pneg %p251
        %p495 = pneg %p275
        %p496 = pneg %p272
        %p497 = pneg %p303
        %p498 = pneg %p300
        %s499 = sand.u32 %s290, 1
        %s500 = scalar_lea.sflag [#allocation7], %s499
        %s501 = sand.u32 %s290, 1
        %s502 = smul.addr %s501, 8
        %s503 = scalar_lea.vmem [#allocation18], %s502
        %p504 = scmp.eq.s32.totalorder %s37, 0
        // Predicated region
        $region93: #{tpu_custom_call.1} parent=63 // pred_check
          %p505 = pneg %p504
        $region94: #{tpu_custom_call.1} parent=63 // pred_check_branch
          %507 = sbr.rel (%p505) target = $region96
        $region95: #{tpu_custom_call.1} parent=63 // pred_region
          %v508 = vld [vmem:[%s440] sm:$0xff]
          %v509 = vld [vmem:[%s440 + $0x8] sm:$0xff]
          %v510 = vld [vmem:[%s1] sm:$0x1]
          %v511 = vld [vmem:[#allocation9] sm:$0x1]
          %vm512 = vcmask 261120
          %v513 = vsel %vm512, %v508, 0.0
          %514 = vadd.xlane.f32.xlu0 %v513
          %v515 = vpop.xlane.xlu0 %514
          %v516 = vsel %vm512, %v509, 0.0
          %517 = vadd.xlane.f32.xlu0 %v516
          %v518 = vpop.xlane.xlu0 %517
          %v519 = vrcp.pop 32.0
          %v520 = vmul.f32 %v515, %v519
          %v521 = vmul.f32 %v518, %v519
          %v522 = vsub.f32 %v508, %v520
          %v523 = vsub.f32 %v509, %v521
          %v524 = vmul.f32 %v522, %v522
          %v525 = vmul.f32 %v523, %v523
          %v526 = vsel %vm512, %v524, 0.0
          %527 = vadd.xlane.f32.xlu0 %v526
          %v528 = vpop.xlane.xlu0 %527
          %v529 = vsel %vm512, %v525, 0.0
          %530 = vadd.xlane.f32.xlu0 %v529
          %v531 = vpop.xlane.xlu0 %530
          %v532 = vmul.f32 %v528, %v519
          %v533 = vmul.f32 %v531, %v519
          %v534 = vadd.f32 %v532, 1e-05
          %v535 = vadd.f32 %v533, 1e-05
          %v536 = vrsqrt.pop %v534
          %v537 = vrsqrt.pop %v535
          %v538 = vmul.f32 %v522, %v536
          %v539 = vmul.f32 %v523, %v537
          %v541 = vlaneseq
          %v542 = vshrl.u32 %v541, 7
          %v543 = vsub.s32 0, %v542
          %v544 = vrot.slane %v510, %v543
          %v546 = vmul.f32 %v538, %v544
          %v547 = vmul.f32 %v539, %v544
          %v549 = vlaneseq
          %v550 = vshrl.u32 %v549, 7
          %v551 = vsub.s32 0, %v550
          %v552 = vrot.slane %v511, %v551
          %v554 = vadd.f32 %v546, %v552
          %v555 = vadd.f32 %v547, %v552
          %556 = vst.msk [vmem:[#allocation2] sm:$0xff] %vm512, %v554
          %557 = vst.msk [vmem:[#allocation2 + $0x8] sm:$0xff] %vm512, %v555
          %v558 = vld [vmem:[#allocation12] sm:$0xff]
          %v559 = vld [vmem:[#allocation12 + $0x8] sm:$0xff]
          %v560 = vld [vmem:[#allocation12 + $0x10] sm:$0xff]
          %v561 = vld [vmem:[#allocation12 + $0x18] sm:$0xff]
          %v563 = vsel %vm512, %v554, 0
          %v566 = vsel %vm512, %v555, 0
          %568 = vmatprep.subr.mxu0 0.0
          %569 = vmatpush1.msra.mxu0 0.0
          %570 = vmatprep.subr.mxu0 0.0
          %571 = vmatpush1.msra.mxu0 0.0
          %572 = vmatprep.subr.mxu0 0.0
          %573 = vmatpush1.msra.mxu0 0.0
          %574 = vmatprep.subr.mxu0 0.0
          %575 = vmatpush1.msra.mxu0 0.0
          %576 = vmatprep.subr.mxu0 0.0
          %577 = vmatpush1.msra.mxu0 0.0
          %578 = vmatprep.subr.mxu0 0.0
          %579 = vmatpush1.msra.mxu0 0.0
          %580 = vmatprep.subr.mxu0 0.0
          %581 = vmatpush1.msra.mxu0 0.0
          %582 = vmatprep.subr.mxu0 0.0
          %583 = vmatpush1.msra.mxu0 0.0
          %584 = vmatprep.subr.mxu0 0.0
          %585 = vmatpush1.msra.mxu0 0.0
          %586 = vmatprep.subr.mxu0 0.0
          %587 = vmatpush1.msra.mxu0 0.0
          %588 = vmatprep.subr.mxu0 0.0
          %589 = vmatpush1.msra.mxu0 0.0
          %590 = vmatprep.subr.mxu0 0.0
          %591 = vmatpush1.msra.mxu0 0.0
          %592 = vmatprep.subr.mxu0 0.0
          %593 = vmatpush1.msra.mxu0 %v561
          %594 = vmatprep.subr.mxu0 0.0
          %595 = vmatpush1.msra.mxu0 %v560
          %596 = vmatprep.subr.mxu0 0.0
          %597 = vmatpush1.msra.mxu0 %v559
          %598 = vmatprep.subr.mxu0 0.0
          %599 = vmatpush1.msra.mxu0 %v558
          %600 = vmatprep.subr.mxu0 0.0
          %601 = vmatpush2.msra.mxu0 0.0
          %602 = vmatprep.subr.mxu0 0.0
          %603 = vmatpush2.msra.mxu0 0.0
          %604 = vmatprep.subr.mxu0 0.0
          %605 = vmatpush2.msra.mxu0 0.0
          %606 = vmatprep.subr.mxu0 0.0
          %607 = vmatpush2.msra.mxu0 0.0
          %608 = vmatprep.subr.mxu0 0.0
          %609 = vmatpush2.msra.mxu0 0.0
          %610 = vmatprep.subr.mxu0 0.0
          %611 = vmatpush2.msra.mxu0 0.0
          %612 = vmatprep.subr.mxu0 0.0
          %613 = vmatpush2.msra.mxu0 0.0
          %614 = vmatprep.subr.mxu0 0.0
          %615 = vmatpush2.msra.mxu0 0.0
          %616 = vmatprep.subr.mxu0 0.0
          %617 = vmatpush2.msra.mxu0 0.0
          %618 = vmatprep.subr.mxu0 0.0
          %619 = vmatpush2.msra.mxu0 0.0
          %620 = vmatprep.subr.mxu0 0.0
          %621 = vmatpush2.msra.mxu0 0.0
          %622 = vmatprep.subr.mxu0 0.0
          %623 = vmatpush2.msra.mxu0 0.0
          %624 = vmatprep.subr.mxu0 0.0
          %625 = vmatpush2.msra.mxu0 0.0
          %626 = vmatprep.subr.mxu0 0.0
          %627 = vmatpush2.msra.mxu0 0.0
          %628 = vmatprep.subr.mxu0 0.0
          %629 = vmatpush2.msra.mxu0 0.0
          %630 = vmatprep.subr.mxu0 0.0
          %631 = vmatpush2.msra.mxu0 0.0
          %632 = vmatprep.mubr.f32.mxu0 0.0
          %633 = vmatmul.mubr.f32.gmra.mxu0 %v563
          %v634 = vpop.f32.mrf.mxu0
          %v635 = vadd.f32 0.0, %v634
          %v636 = vpop.f32.mrf.mxu0
          %637 = vmatprep.mubr.f32.mxu0 0.0
          %638 = vmatmul.mubr.f32.gmra.mxu0 %v566
          %v639 = vpop.f32.mrf.mxu0
          %v640 = vadd.f32 0.0, %v639
          %v641 = vpop.f32.mrf.mxu0
          %642 = vdwg.mxu0
          %643 = vst.msk [vmem:[#allocation3] sm:$0xff] %vm512, %v635
          %644 = vst.msk [vmem:[#allocation3 + $0x8] sm:$0xff] %vm512, %v640
          %v645 = vld [vmem:[#allocation14] sm:$0xff]
          %v646 = vld [vmem:[#allocation14 + $0x8] sm:$0xff]
          %v647 = vld [vmem:[#allocation14 + $0x10] sm:$0xff]
          %v648 = vld [vmem:[#allocation14 + $0x18] sm:$0xff]
          %649 = vmatprep.subr.mxu0 0.0
          %650 = vmatpush1.msra.mxu0 0.0
          %651 = vmatprep.subr.mxu0 0.0
          %652 = vmatpush1.msra.mxu0 0.0
          %653 = vmatprep.subr.mxu0 0.0
          %654 = vmatpush1.msra.mxu0 0.0
          %655 = vmatprep.subr.mxu0 0.0
          %656 = vmatpush1.msra.mxu0 0.0
          %657 = vmatprep.subr.mxu0 0.0
          %658 = vmatpush1.msra.mxu0 0.0
          %659 = vmatprep.subr.mxu0 0.0
          %660 = vmatpush1.msra.mxu0 0.0
          %661 = vmatprep.subr.mxu0 0.0
          %662 = vmatpush1.msra.mxu0 0.0
          %663 = vmatprep.subr.mxu0 0.0
          %664 = vmatpush1.msra.mxu0 0.0
          %665 = vmatprep.subr.mxu0 0.0
          %666 = vmatpush1.msra.mxu0 0.0
          %667 = vmatprep.subr.mxu0 0.0
          %668 = vmatpush1.msra.mxu0 0.0
          %669 = vmatprep.subr.mxu0 0.0
          %670 = vmatpush1.msra.mxu0 0.0
          %671 = vmatprep.subr.mxu0 0.0
          %672 = vmatpush1.msra.mxu0 0.0
          %673 = vmatprep.subr.mxu0 0.0
          %674 = vmatpush1.msra.mxu0 %v648
          %675 = vmatprep.subr.mxu0 0.0
          %676 = vmatpush1.msra.mxu0 %v647
          %677 = vmatprep.subr.mxu0 0.0
          %678 = vmatpush1.msra.mxu0 %v646
          %679 = vmatprep.subr.mxu0 0.0
          %680 = vmatpush1.msra.mxu0 %v645
          %681 = vmatprep.subr.mxu0 0.0
          %682 = vmatpush2.msra.mxu0 0.0
          %683 = vmatprep.subr.mxu0 0.0
          %684 = vmatpush2.msra.mxu0 0.0
          %685 = vmatprep.subr.mxu0 0.0
          %686 = vmatpush2.msra.mxu0 0.0
          %687 = vmatprep.subr.mxu0 0.0
          %688 = vmatpush2.msra.mxu0 0.0
          %689 = vmatprep.subr.mxu0 0.0
          %690 = vmatpush2.msra.mxu0 0.0
          %691 = vmatprep.subr.mxu0 0.0
          %692 = vmatpush2.msra.mxu0 0.0
          %693 = vmatprep.subr.mxu0 0.0
          %694 = vmatpush2.msra.mxu0 0.0
          %695 = vmatprep.subr.mxu0 0.0
          %696 = vmatpush2.msra.mxu0 0.0
          %697 = vmatprep.subr.mxu0 0.0
          %698 = vmatpush2.msra.mxu0 0.0
          %699 = vmatprep.subr.mxu0 0.0
          %700 = vmatpush2.msra.mxu0 0.0
          %701 = vmatprep.subr.mxu0 0.0
          %702 = vmatpush2.msra.mxu0 0.0
          %703 = vmatprep.subr.mxu0 0.0
          %704 = vmatpush2.msra.mxu0 0.0
          %705 = vmatprep.subr.mxu0 0.0
          %706 = vmatpush2.msra.mxu0 0.0
          %707 = vmatprep.subr.mxu0 0.0
          %708 = vmatpush2.msra.mxu0 0.0
          %709 = vmatprep.subr.mxu0 0.0
          %710 = vmatpush2.msra.mxu0 0.0
          %711 = vmatprep.subr.mxu0 0.0
          %712 = vmatpush2.msra.mxu0 0.0
          %713 = vmatprep.mubr.f32.mxu0 0.0
          %714 = vmatmul.mubr.f32.gmra.mxu0 %v563
          %v715 = vpop.f32.mrf.mxu0
          %v716 = vadd.f32 0.0, %v715
          %v717 = vpop.f32.mrf.mxu0
          %718 = vmatprep.mubr.f32.mxu0 0.0
          %719 = vmatmul.mubr.f32.gmra.mxu0 %v566
          %v720 = vpop.f32.mrf.mxu0
          %v721 = vadd.f32 0.0, %v720
          %v722 = vpop.f32.mrf.mxu0
          %723 = vdwg.mxu0
          %vm724 = vcmask 64512
          %725 = vst.msk [vmem:[#allocation4] sm:$0xff] %vm724, %v716
          %726 = vst.msk [vmem:[#allocation4 + $0x8] sm:$0xff] %vm724, %v721
          %729 = vrot.lane.b32.xlu0 %v716, 120
          %v730 = vpop.permute.xlu0 %729
          %731 = vrot.lane.b32.xlu0 %v721, 120
          %v732 = vpop.permute.xlu0 %731
          %s735 = scalar_lea.vmem [#allocation4], 16
          %736 = vst.msk [vmem:[%s735] sm:$0xff] %vm724, %v730
          %737 = vst.msk [vmem:[%s735 + $0x8] sm:$0xff] %vm724, %v732
          %738 = vrot.lane.b32.xlu0 %v716, 112
          %v739 = vpop.permute.xlu0 %738
          %740 = vrot.lane.b32.xlu0 %v721, 112
          %v741 = vpop.permute.xlu0 %740
          %s744 = scalar_lea.vmem [#allocation4], 32
          %745 = vst.msk [vmem:[%s744] sm:$0xff] %vm724, %v739
          %746 = vst.msk [vmem:[%s744 + $0x8] sm:$0xff] %vm724, %v741
          %747 = vrot.lane.b32.xlu0 %v716, 104
          %v748 = vpop.permute.xlu0 %747
          %749 = vrot.lane.b32.xlu0 %v721, 104
          %v750 = vpop.permute.xlu0 %749
          %s753 = scalar_lea.vmem [#allocation4], 48
          %754 = vst.msk [vmem:[%s753] sm:$0xff] %vm724, %v748
          %755 = vst.msk [vmem:[%s753 + $0x8] sm:$0xff] %vm724, %v750
        $region96: #{tpu_custom_call.1} parent=63 // pred_fallthru
          _
        %s756 = smul.u32 %s37, 8
        %s757 = scalar_lea.vmem [#allocation2], %s756
        %v758 = vld [vmem:[%s757] sm:$0xff]
        %v759 = vld [vmem:[#allocation11] sm:$0xff]
        %v760 = vld [vmem:[#allocation11 + $0x8] sm:$0xff]
        %v761 = vld [vmem:[#allocation11 + $0x10] sm:$0xff]
        %v762 = vld [vmem:[#allocation11 + $0x18] sm:$0xff]
        %vm763 = vcmask 261120
        %v765 = vsel %vm763, %v758, 0
        %767 = vmatprep.subr.mxu0 0.0
        %768 = vmatpush1.msra.mxu0 0.0
        %769 = vmatprep.subr.mxu0 0.0
        %770 = vmatpush1.msra.mxu0 0.0
        %771 = vmatprep.subr.mxu0 0.0
        %772 = vmatpush1.msra.mxu0 0.0
        %773 = vmatprep.subr.mxu0 0.0
        %774 = vmatpush1.msra.mxu0 0.0
        %775 = vmatprep.subr.mxu0 0.0
        %776 = vmatpush1.msra.mxu0 0.0
        %777 = vmatprep.subr.mxu0 0.0
        %778 = vmatpush1.msra.mxu0 0.0
        %779 = vmatprep.subr.mxu0 0.0
        %780 = vmatpush1.msra.mxu0 0.0
        %781 = vmatprep.subr.mxu0 0.0
        %782 = vmatpush1.msra.mxu0 0.0
        %783 = vmatprep.subr.mxu0 0.0
        %784 = vmatpush1.msra.mxu0 0.0
        %785 = vmatprep.subr.mxu0 0.0
        %786 = vmatpush1.msra.mxu0 0.0
        %787 = vmatprep.subr.mxu0 0.0
        %788 = vmatpush1.msra.mxu0 0.0
        %789 = vmatprep.subr.mxu0 0.0
        %790 = vmatpush1.msra.mxu0 0.0
        %791 = vmatprep.subr.mxu0 0.0
        %792 = vmatpush1.msra.mxu0 %v762
        %793 = vmatprep.subr.mxu0 0.0
        %794 = vmatpush1.msra.mxu0 %v761
        %795 = vmatprep.subr.mxu0 0.0
        %796 = vmatpush1.msra.mxu0 %v760
        %797 = vmatprep.subr.mxu0 0.0
        %798 = vmatpush1.msra.mxu0 %v759
        %799 = vmatprep.subr.mxu0 0.0
        %800 = vmatpush2.msra.mxu0 0.0
        %801 = vmatprep.subr.mxu0 0.0
        %802 = vmatpush2.msra.mxu0 0.0
        %803 = vmatprep.subr.mxu0 0.0
        %804 = vmatpush2.msra.mxu0 0.0
        %805 = vmatprep.subr.mxu0 0.0
        %806 = vmatpush2.msra.mxu0 0.0
        %807 = vmatprep.subr.mxu0 0.0
        %808 = vmatpush2.msra.mxu0 0.0
        %809 = vmatprep.subr.mxu0 0.0
        %810 = vmatpush2.msra.mxu0 0.0
        %811 = vmatprep.subr.mxu0 0.0
        %812 = vmatpush2.msra.mxu0 0.0
        %813 = vmatprep.subr.mxu0 0.0
        %814 = vmatpush2.msra.mxu0 0.0
        %815 = vmatprep.subr.mxu0 0.0
        %816 = vmatpush2.msra.mxu0 0.0
        %817 = vmatprep.subr.mxu0 0.0
        %818 = vmatpush2.msra.mxu0 0.0
        %819 = vmatprep.subr.mxu0 0.0
        %820 = vmatpush2.msra.mxu0 0.0
        %821 = vmatprep.subr.mxu0 0.0
        %822 = vmatpush2.msra.mxu0 0.0
        %823 = vmatprep.subr.mxu0 0.0
        %824 = vmatpush2.msra.mxu0 0.0
        %825 = vmatprep.subr.mxu0 0.0
        %826 = vmatpush2.msra.mxu0 0.0
        %827 = vmatprep.subr.mxu0 0.0
        %828 = vmatpush2.msra.mxu0 0.0
        %829 = vmatprep.subr.mxu0 0.0
        %830 = vmatpush2.msra.mxu0 0.0
        %831 = vmatprep.mubr.f32.mxu0 0.0
        %832 = vmatmul.mubr.f32.gmra.mxu0 %v765
        %v833 = vpop.f32.mrf.mxu0
        %v834 = vadd.f32 0.0, %v833
        %v835 = vpop.f32.mrf.mxu0
        %836 = vdwg.mxu0
        %v837 = vld [vmem:[%s6] sm:$0xf]
        %v838 = vlaneseq
        %v839 = vshrl.u32 %v838, 7
        %v840 = vsub.s32 0, %v839
        %v841 = vrot.slane %v837, %v840
        %v842 = vmul.f32 %v834, %v841
        %v843 = vlaneseq
        %v844 = vshrl.u32 %v843, 7
        %v845 = vsub.s32 1, %v844
        %v846 = vrot.slane %v837, %v845
        %v847 = vmul.f32 %v834, %v846
        %v848 = vlaneseq
        %v849 = vshrl.u32 %v848, 7
        %v850 = vsub.s32 2, %v849
        %v851 = vrot.slane %v837, %v850
        %v852 = vmul.f32 %v834, %v851
        %v853 = vlaneseq
        %v854 = vshrl.u32 %v853, 7
        %v855 = vsub.s32 3, %v854
        %v856 = vrot.slane %v837, %v855
        %v857 = vmul.f32 %v834, %v856
        %v858 = vld [vmem:[#allocation3] sm:$0xff]
        %v859 = vld [vmem:[#allocation3 + $0x8] sm:$0xff]
        %v861 = vsel %vm763, %v842, 0
        %v864 = vsel %vm763, %v847, 0
        %v867 = vsel %vm763, %v852, 0
        %v870 = vsel %vm763, %v857, 0
        %v873 = vsel %vm763, %v858, 0
        %v876 = vsel %vm763, %v859, 0
        %878 = vmatprep.subr.mxu0 0.0
        %879 = vmatpush1.xpose.msra.mxu0 0.0
        %880 = vmatprep.subr.mxu0 0.0
        %881 = vmatpush1.xpose.msra.mxu0 0.0
        %882 = vmatprep.subr.mxu0 0.0
        %883 = vmatpush1.xpose.msra.mxu0 0.0
        %884 = vmatprep.subr.mxu0 0.0
        %885 = vmatpush1.xpose.msra.mxu0 0.0
        %886 = vmatprep.subr.mxu0 0.0
        %887 = vmatpush1.xpose.msra.mxu0 0.0
        %888 = vmatprep.subr.mxu0 0.0
        %889 = vmatpush1.xpose.msra.mxu0 0.0
        %890 = vmatprep.subr.mxu0 0.0
        %891 = vmatpush1.xpose.msra.mxu0 0.0
        %892 = vmatprep.subr.mxu0 0.0
        %893 = vmatpush1.xpose.msra.mxu0 0.0
        %894 = vmatprep.subr.mxu0 0.0
        %895 = vmatpush1.xpose.msra.mxu0 0.0
        %896 = vmatprep.subr.mxu0 0.0
        %897 = vmatpush1.xpose.msra.mxu0 0.0
        %898 = vmatprep.subr.mxu0 0.0
        %899 = vmatpush1.xpose.msra.mxu0 0.0
        %900 = vmatprep.subr.mxu0 0.0
        %901 = vmatpush1.xpose.msra.mxu0 0.0
        %902 = vmatprep.subr.mxu0 0.0
        %903 = vmatpush1.xpose.msra.mxu0 0.0
        %904 = vmatprep.subr.mxu0 0.0
        %905 = vmatpush1.xpose.msra.mxu0 0.0
        %906 = vmatprep.subr.mxu0 0.0
        %907 = vmatpush1.xpose.msra.mxu0 %v876
        %908 = vmatprep.subr.mxu0 0.0
        %909 = vmatpush1.xpose.msra.mxu0 %v873
        %910 = vmatprep.subr.mxu0 0.0
        %911 = vmatpush2.xpose.msra.mxu0 0.0
        %912 = vmatprep.subr.mxu0 0.0
        %913 = vmatpush2.xpose.msra.mxu0 0.0
        %914 = vmatprep.subr.mxu0 0.0
        %915 = vmatpush2.xpose.msra.mxu0 0.0
        %916 = vmatprep.subr.mxu0 0.0
        %917 = vmatpush2.xpose.msra.mxu0 0.0
        %918 = vmatprep.subr.mxu0 0.0
        %919 = vmatpush2.xpose.msra.mxu0 0.0
        %920 = vmatprep.subr.mxu0 0.0
        %921 = vmatpush2.xpose.msra.mxu0 0.0
        %922 = vmatprep.subr.mxu0 0.0
        %923 = vmatpush2.xpose.msra.mxu0 0.0
        %924 = vmatprep.subr.mxu0 0.0
        %925 = vmatpush2.xpose.msra.mxu0 0.0
        %926 = vmatprep.subr.mxu0 0.0
        %927 = vmatpush2.xpose.msra.mxu0 0.0
        %928 = vmatprep.subr.mxu0 0.0
        %929 = vmatpush2.xpose.msra.mxu0 0.0
        %930 = vmatprep.subr.mxu0 0.0
        %931 = vmatpush2.xpose.msra.mxu0 0.0
        %932 = vmatprep.subr.mxu0 0.0
        %933 = vmatpush2.xpose.msra.mxu0 0.0
        %934 = vmatprep.subr.mxu0 0.0
        %935 = vmatpush2.xpose.msra.mxu0 0.0
        %936 = vmatprep.subr.mxu0 0.0
        %937 = vmatpush2.xpose.msra.mxu0 0.0
        %938 = vmatprep.subr.mxu0 0.0
        %939 = vmatpush2.xpose.msra.mxu0 0.0
        %940 = vmatprep.subr.mxu0 0.0
        %941 = vmatpush2.xpose.msra.mxu0 0.0
        %942 = vmatprep.mubr.f32.mxu0 0.0
        %943 = vmatmul.mubr.f32.gmra.mxu0 %v861
        %v944 = vpop.f32.mrf.mxu0
        %v945 = vadd.f32 0.0, %v944
        %v946 = vpop.f32.mrf.mxu0
        %947 = vmatprep.mubr.f32.mxu0 0.0
        %948 = vmatmul.mubr.f32.gmra.mxu0 %v864
        %v949 = vpop.f32.mrf.mxu0
        %v950 = vadd.f32 0.0, %v949
        %v951 = vpop.f32.mrf.mxu0
        %952 = vmatprep.mubr.f32.mxu0 0.0
        %953 = vmatmul.mubr.f32.gmra.mxu0 %v867
        %v954 = vpop.f32.mrf.mxu0
        %v955 = vadd.f32 0.0, %v954
        %v956 = vpop.f32.mrf.mxu0
        %957 = vmatprep.mubr.f32.mxu0 0.0
        %958 = vmatmul.mubr.f32.gmra.mxu0 %v870
        %v959 = vpop.f32.mrf.mxu0
        %v960 = vadd.f32 0.0, %v959
        %v961 = vpop.f32.mrf.mxu0
        %962 = vdwg.mxu0
        %vm963 = vcmask 130048
        %v964 = vsel %vm963, %v945, -inf
        %965 = vmax.xlane.f32.xlu0 %v964
        %v966 = vpop.xlane.xlu0 %965
        %v967 = vsel %vm963, %v950, -inf
        %968 = vmax.xlane.f32.xlu0 %v967
        %v969 = vpop.xlane.xlu0 %968
        %v970 = vsel %vm963, %v955, -inf
        %971 = vmax.xlane.f32.xlu0 %v970
        %v972 = vpop.xlane.xlu0 %971
        %v973 = vsel %vm963, %v960, -inf
        %974 = vmax.xlane.f32.xlu0 %v973
        %v975 = vpop.xlane.xlu0 %974
        %v976 = vsub.f32 %v945, %v966
        %v977 = vsub.f32 %v950, %v969
        %v978 = vsub.f32 %v955, %v972
        %v979 = vsub.f32 %v960, %v975
        %v980 = vmul.f32 %v976, 1.442695
        %v981 = vpow.pop %v980
        %v982 = vmul.f32 %v977, 1.442695
        %v983 = vpow.pop %v982
        %v984 = vmul.f32 %v978, 1.442695
        %v985 = vpow.pop %v984
        %v986 = vmul.f32 %v979, 1.442695
        %v987 = vpow.pop %v986
        %v988 = vsel %vm963, %v981, 0.0
        %989 = vadd.xlane.f32.xlu0 %v988
        %v990 = vpop.xlane.xlu0 %989
        %v991 = vsel %vm963, %v983, 0.0
        %992 = vadd.xlane.f32.xlu0 %v991
        %v993 = vpop.xlane.xlu0 %992
        %v994 = vsel %vm963, %v985, 0.0
        %995 = vadd.xlane.f32.xlu0 %v994
        %v996 = vpop.xlane.xlu0 %995
        %v997 = vsel %vm963, %v987, 0.0
        %998 = vadd.xlane.f32.xlu0 %v997
        %v999 = vpop.xlane.xlu0 %998
        %v1000 = vrcp.pop %v990
        %v1001 = vmul.f32 %v981, %v1000
        %v1002 = vrcp.pop %v993
        %v1003 = vmul.f32 %v983, %v1002
        %v1004 = vrcp.pop %v996
        %v1005 = vmul.f32 %v985, %v1004
        %v1006 = vrcp.pop %v999
        %v1007 = vmul.f32 %v987, %v1006
        %s1008 = sld [smem:[#allocation15]]
        %v1009 = vstv %s1008
        %v1010 = vmul.f32 %v1001, %v1009
        %s1011 = sld [smem:[#allocation15 + $0x80]]
        %v1012 = vstv %s1011
        %v1013 = vmul.f32 %v1003, %v1012
        %v1014 = vadd.f32 %v1010, %v1013
        %s1015 = sld [smem:[#allocation15 + $0x100]]
        %v1016 = vstv %s1015
        %v1017 = vmul.f32 %v1005, %v1016
        %v1018 = vadd.f32 %v1014, %v1017
        %s1019 = sld [smem:[#allocation15 + $0x180]]
        %v1020 = vstv %s1019
        %v1021 = vmul.f32 %v1007, %v1020
        %v1022 = vadd.f32 %v1018, %v1021
        %s1023 = sld [smem:[#allocation15 + $0x1]]
        %v1024 = vstv %s1023
        %v1025 = vmul.f32 %v1001, %v1024
        %s1026 = sld [smem:[#allocation15 + $0x81]]
        %v1027 = vstv %s1026
        %v1028 = vmul.f32 %v1003, %v1027
        %v1029 = vadd.f32 %v1025, %v1028
        %s1030 = sld [smem:[#allocation15 + $0x101]]
        %v1031 = vstv %s1030
        %v1032 = vmul.f32 %v1005, %v1031
        %v1033 = vadd.f32 %v1029, %v1032
        %s1034 = sld [smem:[#allocation15 + $0x181]]
        %v1035 = vstv %s1034
        %v1036 = vmul.f32 %v1007, %v1035
        %v1037 = vadd.f32 %v1033, %v1036
        %s1038 = sld [smem:[#allocation15 + $0x2]]
        %v1039 = vstv %s1038
        %v1040 = vmul.f32 %v1001, %v1039
        %s1041 = sld [smem:[#allocation15 + $0x82]]
        %v1042 = vstv %s1041
        %v1043 = vmul.f32 %v1003, %v1042
        %v1044 = vadd.f32 %v1040, %v1043
        %s1045 = sld [smem:[#allocation15 + $0x102]]
        %v1046 = vstv %s1045
        %v1047 = vmul.f32 %v1005, %v1046
        %v1048 = vadd.f32 %v1044, %v1047
        %s1049 = sld [smem:[#allocation15 + $0x182]]
        %v1050 = vstv %s1049
        %v1051 = vmul.f32 %v1007, %v1050
        %v1052 = vadd.f32 %v1048, %v1051
        %s1053 = sld [smem:[#allocation15 + $0x3]]
        %v1054 = vstv %s1053
        %v1055 = vmul.f32 %v1001, %v1054
        %s1056 = sld [smem:[#allocation15 + $0x83]]
        %v1057 = vstv %s1056
        %v1058 = vmul.f32 %v1003, %v1057
        %v1059 = vadd.f32 %v1055, %v1058
        %s1060 = sld [smem:[#allocation15 + $0x103]]
        %v1061 = vstv %s1060
        %v1062 = vmul.f32 %v1005, %v1061
        %v1063 = vadd.f32 %v1059, %v1062
        %s1064 = sld [smem:[#allocation15 + $0x183]]
        %v1065 = vstv %s1064
        %v1066 = vmul.f32 %v1007, %v1065
        %v1067 = vadd.f32 %v1063, %v1066
        %v1068 = vld [vmem:[#allocation4] sm:$0xff]
        %v1069 = vld [vmem:[#allocation4 + $0x8] sm:$0xff]
        %v1070 = vld [vmem:[#allocation4 + $0x10] sm:$0xff]
        %v1071 = vld [vmem:[#allocation4 + $0x18] sm:$0xff]
        %v1072 = vld [vmem:[#allocation4 + $0x20] sm:$0xff]
        %v1073 = vld [vmem:[#allocation4 + $0x28] sm:$0xff]
        %v1074 = vld [vmem:[#allocation4 + $0x30] sm:$0xff]
        %v1075 = vld [vmem:[#allocation4 + $0x38] sm:$0xff]
        %v1077 = vsel %vm963, %v1022, 0
        %1079 = vmatprep.subr.mxu0 0.0
        %1080 = vmatpush1.msra.mxu0 0.0
        %1081 = vmatprep.subr.mxu0 0.0
        %1082 = vmatpush1.msra.mxu0 0.0
        %1083 = vmatprep.subr.mxu0 0.0
        %1084 = vmatpush1.msra.mxu0 0.0
        %1085 = vmatprep.subr.mxu0 0.0
        %1086 = vmatpush1.msra.mxu0 0.0
        %1087 = vmatprep.subr.mxu0 0.0
        %1088 = vmatpush1.msra.mxu0 0.0
        %1089 = vmatprep.subr.mxu0 0.0
        %1090 = vmatpush1.msra.mxu0 0.0
        %1091 = vmatprep.subr.mxu0 0.0
        %1092 = vmatpush1.msra.mxu0 0.0
        %1093 = vmatprep.subr.mxu0 0.0
        %1094 = vmatpush1.msra.mxu0 0.0
        %1095 = vmatprep.subr.mxu0 0.0
        %1096 = vmatpush1.msra.mxu0 0.0
        %1097 = vmatprep.subr.mxu0 0.0
        %1098 = vmatpush1.msra.mxu0 0.0
        %1099 = vmatprep.subr.mxu0 0.0
        %1100 = vmatpush1.msra.mxu0 0.0
        %1101 = vmatprep.subr.mxu0 0.0
        %1102 = vmatpush1.msra.mxu0 0.0
        %1103 = vmatprep.subr.mxu0 0.0
        %1104 = vmatpush1.msra.mxu0 0.0
        %1105 = vmatprep.subr.mxu0 0.0
        %1106 = vmatpush1.msra.mxu0 0.0
        %1107 = vmatprep.subr.mxu0 0.0
        %1108 = vmatpush1.msra.mxu0 %v1069
        %1109 = vmatprep.subr.mxu0 0.0
        %1110 = vmatpush1.msra.mxu0 %v1068
        %1111 = vmatprep.subr.mxu0 0.0
        %1112 = vmatpush2.msra.mxu0 0.0
        %1113 = vmatprep.subr.mxu0 0.0
        %1114 = vmatpush2.msra.mxu0 0.0
        %1115 = vmatprep.subr.mxu0 0.0
        %1116 = vmatpush2.msra.mxu0 0.0
        %1117 = vmatprep.subr.mxu0 0.0
        %1118 = vmatpush2.msra.mxu0 0.0
        %1119 = vmatprep.subr.mxu0 0.0
        %1120 = vmatpush2.msra.mxu0 0.0
        %1121 = vmatprep.subr.mxu0 0.0
        %1122 = vmatpush2.msra.mxu0 0.0
        %1123 = vmatprep.subr.mxu0 0.0
        %1124 = vmatpush2.msra.mxu0 0.0
        %1125 = vmatprep.subr.mxu0 0.0
        %1126 = vmatpush2.msra.mxu0 0.0
        %1127 = vmatprep.subr.mxu0 0.0
        %1128 = vmatpush2.msra.mxu0 0.0
        %1129 = vmatprep.subr.mxu0 0.0
        %1130 = vmatpush2.msra.mxu0 0.0
        %1131 = vmatprep.subr.mxu0 0.0
        %1132 = vmatpush2.msra.mxu0 0.0
        %1133 = vmatprep.subr.mxu0 0.0
        %1134 = vmatpush2.msra.mxu0 0.0
        %1135 = vmatprep.subr.mxu0 0.0
        %1136 = vmatpush2.msra.mxu0 0.0
        %1137 = vmatprep.subr.mxu0 0.0
        %1138 = vmatpush2.msra.mxu0 0.0
        %1139 = vmatprep.subr.mxu0 0.0
        %1140 = vmatpush2.msra.mxu0 0.0
        %1141 = vmatprep.subr.mxu0 0.0
        %1142 = vmatpush2.msra.mxu0 0.0
        %1143 = vmatprep.mubr.f32.mxu0 0.0
        %1144 = vmatmul.mubr.f32.gmra.mxu0 %v1077
        %v1145 = vpop.f32.mrf.mxu0
        %v1146 = vadd.f32 0.0, %v1145
        %v1147 = vpop.f32.mrf.mxu0
        %1148 = vdwg.mxu0
        %v1150 = vsel %vm963, %v1037, 0
        %1152 = vmatprep.subr.mxu0 0.0
        %1153 = vmatpush1.msra.mxu0 0.0
        %1154 = vmatprep.subr.mxu0 0.0
        %1155 = vmatpush1.msra.mxu0 0.0
        %1156 = vmatprep.subr.mxu0 0.0
        %1157 = vmatpush1.msra.mxu0 0.0
        %1158 = vmatprep.subr.mxu0 0.0
        %1159 = vmatpush1.msra.mxu0 0.0
        %1160 = vmatprep.subr.mxu0 0.0
        %1161 = vmatpush1.msra.mxu0 0.0
        %1162 = vmatprep.subr.mxu0 0.0
        %1163 = vmatpush1.msra.mxu0 0.0
        %1164 = vmatprep.subr.mxu0 0.0
        %1165 = vmatpush1.msra.mxu0 0.0
        %1166 = vmatprep.subr.mxu0 0.0
        %1167 = vmatpush1.msra.mxu0 0.0
        %1168 = vmatprep.subr.mxu0 0.0
        %1169 = vmatpush1.msra.mxu0 0.0
        %1170 = vmatprep.subr.mxu0 0.0
        %1171 = vmatpush1.msra.mxu0 0.0
        %1172 = vmatprep.subr.mxu0 0.0
        %1173 = vmatpush1.msra.mxu0 0.0
        %1174 = vmatprep.subr.mxu0 0.0
        %1175 = vmatpush1.msra.mxu0 0.0
        %1176 = vmatprep.subr.mxu0 0.0
        %1177 = vmatpush1.msra.mxu0 0.0
        %1178 = vmatprep.subr.mxu0 0.0
        %1179 = vmatpush1.msra.mxu0 0.0
        %1180 = vmatprep.subr.mxu0 0.0
        %1181 = vmatpush1.msra.mxu0 %v1071
        %1182 = vmatprep.subr.mxu0 0.0
        %1183 = vmatpush1.msra.mxu0 %v1070
        %1184 = vmatprep.subr.mxu0 0.0
        %1185 = vmatpush2.msra.mxu0 0.0
        %1186 = vmatprep.subr.mxu0 0.0
        %1187 = vmatpush2.msra.mxu0 0.0
        %1188 = vmatprep.subr.mxu0 0.0
        %1189 = vmatpush2.msra.mxu0 0.0
        %1190 = vmatprep.subr.mxu0 0.0
        %1191 = vmatpush2.msra.mxu0 0.0
        %1192 = vmatprep.subr.mxu0 0.0
        %1193 = vmatpush2.msra.mxu0 0.0
        %1194 = vmatprep.subr.mxu0 0.0
        %1195 = vmatpush2.msra.mxu0 0.0
        %1196 = vmatprep.subr.mxu0 0.0
        %1197 = vmatpush2.msra.mxu0 0.0
        %1198 = vmatprep.subr.mxu0 0.0
        %1199 = vmatpush2.msra.mxu0 0.0
        %1200 = vmatprep.subr.mxu0 0.0
        %1201 = vmatpush2.msra.mxu0 0.0
        %1202 = vmatprep.subr.mxu0 0.0
        %1203 = vmatpush2.msra.mxu0 0.0
        %1204 = vmatprep.subr.mxu0 0.0
        %1205 = vmatpush2.msra.mxu0 0.0
        %1206 = vmatprep.subr.mxu0 0.0
        %1207 = vmatpush2.msra.mxu0 0.0
        %1208 = vmatprep.subr.mxu0 0.0
        %1209 = vmatpush2.msra.mxu0 0.0
        %1210 = vmatprep.subr.mxu0 0.0
        %1211 = vmatpush2.msra.mxu0 0.0
        %1212 = vmatprep.subr.mxu0 0.0
        %1213 = vmatpush2.msra.mxu0 0.0
        %1214 = vmatprep.subr.mxu0 0.0
        %1215 = vmatpush2.msra.mxu0 0.0
        %1216 = vmatprep.mubr.f32.mxu0 0.0
        %1217 = vmatmul.mubr.f32.gmra.mxu0 %v1150
        %v1218 = vpop.f32.mrf.mxu0
        %v1219 = vadd.f32 0.0, %v1218
        %v1220 = vpop.f32.mrf.mxu0
        %1221 = vdwg.mxu0
        %v1223 = vsel %vm963, %v1052, 0
        %1225 = vmatprep.subr.mxu0 0.0
        %1226 = vmatpush1.msra.mxu0 0.0
        %1227 = vmatprep.subr.mxu0 0.0
        %1228 = vmatpush1.msra.mxu0 0.0
        %1229 = vmatprep.subr.mxu0 0.0
        %1230 = vmatpush1.msra.mxu0 0.0
        %1231 = vmatprep.subr.mxu0 0.0
        %1232 = vmatpush1.msra.mxu0 0.0
        %1233 = vmatprep.subr.mxu0 0.0
        %1234 = vmatpush1.msra.mxu0 0.0
        %1235 = vmatprep.subr.mxu0 0.0
        %1236 = vmatpush1.msra.mxu0 0.0
        %1237 = vmatprep.subr.mxu0 0.0
        %1238 = vmatpush1.msra.mxu0 0.0
        %1239 = vmatprep.subr.mxu0 0.0
        %1240 = vmatpush1.msra.mxu0 0.0
        %1241 = vmatprep.subr.mxu0 0.0
        %1242 = vmatpush1.msra.mxu0 0.0
        %1243 = vmatprep.subr.mxu0 0.0
        %1244 = vmatpush1.msra.mxu0 0.0
        %1245 = vmatprep.subr.mxu0 0.0
        %1246 = vmatpush1.msra.mxu0 0.0
        %1247 = vmatprep.subr.mxu0 0.0
        %1248 = vmatpush1.msra.mxu0 0.0
        %1249 = vmatprep.subr.mxu0 0.0
        %1250 = vmatpush1.msra.mxu0 0.0
        %1251 = vmatprep.subr.mxu0 0.0
        %1252 = vmatpush1.msra.mxu0 0.0
        %1253 = vmatprep.subr.mxu0 0.0
        %1254 = vmatpush1.msra.mxu0 %v1073
        %1255 = vmatprep.subr.mxu0 0.0
        %1256 = vmatpush1.msra.mxu0 %v1072
        %1257 = vmatprep.subr.mxu0 0.0
        %1258 = vmatpush2.msra.mxu0 0.0
        %1259 = vmatprep.subr.mxu0 0.0
        %1260 = vmatpush2.msra.mxu0 0.0
        %1261 = vmatprep.subr.mxu0 0.0
        %1262 = vmatpush2.msra.mxu0 0.0
        %1263 = vmatprep.subr.mxu0 0.0
        %1264 = vmatpush2.msra.mxu0 0.0
        %1265 = vmatprep.subr.mxu0 0.0
        %1266 = vmatpush2.msra.mxu0 0.0
        %1267 = vmatprep.subr.mxu0 0.0
        %1268 = vmatpush2.msra.mxu0 0.0
        %1269 = vmatprep.subr.mxu0 0.0
        %1270 = vmatpush2.msra.mxu0 0.0
        %1271 = vmatprep.subr.mxu0 0.0
        %1272 = vmatpush2.msra.mxu0 0.0
        %1273 = vmatprep.subr.mxu0 0.0
        %1274 = vmatpush2.msra.mxu0 0.0
        %1275 = vmatprep.subr.mxu0 0.0
        %1276 = vmatpush2.msra.mxu0 0.0
        %1277 = vmatprep.subr.mxu0 0.0
        %1278 = vmatpush2.msra.mxu0 0.0
        %1279 = vmatprep.subr.mxu0 0.0
        %1280 = vmatpush2.msra.mxu0 0.0
        %1281 = vmatprep.subr.mxu0 0.0
        %1282 = vmatpush2.msra.mxu0 0.0
        %1283 = vmatprep.subr.mxu0 0.0
        %1284 = vmatpush2.msra.mxu0 0.0
        %1285 = vmatprep.subr.mxu0 0.0
        %1286 = vmatpush2.msra.mxu0 0.0
        %1287 = vmatprep.subr.mxu0 0.0
        %1288 = vmatpush2.msra.mxu0 0.0
        %1289 = vmatprep.mubr.f32.mxu0 0.0
        %1290 = vmatmul.mubr.f32.gmra.mxu0 %v1223
        %v1291 = vpop.f32.mrf.mxu0
        %v1292 = vadd.f32 0.0, %v1291
        %v1293 = vpop.f32.mrf.mxu0
        %1294 = vdwg.mxu0
        %v1296 = vsel %vm963, %v1067, 0
        %1298 = vmatprep.subr.mxu0 0.0
        %1299 = vmatpush1.msra.mxu0 0.0
        %1300 = vmatprep.subr.mxu0 0.0
        %1301 = vmatpush1.msra.mxu0 0.0
        %1302 = vmatprep.subr.mxu0 0.0
        %1303 = vmatpush1.msra.mxu0 0.0
        %1304 = vmatprep.subr.mxu0 0.0
        %1305 = vmatpush1.msra.mxu0 0.0
        %1306 = vmatprep.subr.mxu0 0.0
        %1307 = vmatpush1.msra.mxu0 0.0
        %1308 = vmatprep.subr.mxu0 0.0
        %1309 = vmatpush1.msra.mxu0 0.0
        %1310 = vmatprep.subr.mxu0 0.0
        %1311 = vmatpush1.msra.mxu0 0.0
        %1312 = vmatprep.subr.mxu0 0.0
        %1313 = vmatpush1.msra.mxu0 0.0
        %1314 = vmatprep.subr.mxu0 0.0
        %1315 = vmatpush1.msra.mxu0 0.0
        %1316 = vmatprep.subr.mxu0 0.0
        %1317 = vmatpush1.msra.mxu0 0.0
        %1318 = vmatprep.subr.mxu0 0.0
        %1319 = vmatpush1.msra.mxu0 0.0
        %1320 = vmatprep.subr.mxu0 0.0
        %1321 = vmatpush1.msra.mxu0 0.0
        %1322 = vmatprep.subr.mxu0 0.0
        %1323 = vmatpush1.msra.mxu0 0.0
        %1324 = vmatprep.subr.mxu0 0.0
        %1325 = vmatpush1.msra.mxu0 0.0
        %1326 = vmatprep.subr.mxu0 0.0
        %1327 = vmatpush1.msra.mxu0 %v1075
        %1328 = vmatprep.subr.mxu0 0.0
        %1329 = vmatpush1.msra.mxu0 %v1074
        %1330 = vmatprep.subr.mxu0 0.0
        %1331 = vmatpush2.msra.mxu0 0.0
        %1332 = vmatprep.subr.mxu0 0.0
        %1333 = vmatpush2.msra.mxu0 0.0
        %1334 = vmatprep.subr.mxu0 0.0
        %1335 = vmatpush2.msra.mxu0 0.0
        %1336 = vmatprep.subr.mxu0 0.0
        %1337 = vmatpush2.msra.mxu0 0.0
        %1338 = vmatprep.subr.mxu0 0.0
        %1339 = vmatpush2.msra.mxu0 0.0
        %1340 = vmatprep.subr.mxu0 0.0
        %1341 = vmatpush2.msra.mxu0 0.0
        %1342 = vmatprep.subr.mxu0 0.0
        %1343 = vmatpush2.msra.mxu0 0.0
        %1344 = vmatprep.subr.mxu0 0.0
        %1345 = vmatpush2.msra.mxu0 0.0
        %1346 = vmatprep.subr.mxu0 0.0
        %1347 = vmatpush2.msra.mxu0 0.0
        %1348 = vmatprep.subr.mxu0 0.0
        %1349 = vmatpush2.msra.mxu0 0.0
        %1350 = vmatprep.subr.mxu0 0.0
        %1351 = vmatpush2.msra.mxu0 0.0
        %1352 = vmatprep.subr.mxu0 0.0
        %1353 = vmatpush2.msra.mxu0 0.0
        %1354 = vmatprep.subr.mxu0 0.0
        %1355 = vmatpush2.msra.mxu0 0.0
        %1356 = vmatprep.subr.mxu0 0.0
        %1357 = vmatpush2.msra.mxu0 0.0
        %1358 = vmatprep.subr.mxu0 0.0
        %1359 = vmatpush2.msra.mxu0 0.0
        %1360 = vmatprep.subr.mxu0 0.0
        %1361 = vmatpush2.msra.mxu0 0.0
        %1362 = vmatprep.mubr.f32.mxu0 0.0
        %1363 = vmatmul.mubr.f32.gmra.mxu0 %v1296
        %v1364 = vpop.f32.mrf.mxu0
        %v1365 = vadd.f32 0.0, %v1364
        %v1366 = vpop.f32.mrf.mxu0
        %1367 = vdwg.mxu0
        %1369 = vrot.lane.b32.xlu0 %v1219, 8
        %v1370 = vpop.permute.xlu0 %1369
        %1373 = vrot.lane.b32.xlu0 %v1292, 16
        %v1374 = vpop.permute.xlu0 %1373
        %1377 = vrot.lane.b32.xlu0 %v1365, 24
        %v1378 = vpop.permute.xlu0 %1377
        %vm1380 = vcmask 64512
        %v1381 = vsel %vm1380, %v1146, %v1370
        %v1382 = vsel %vm963, %v1381, %v1374
        %vm1383 = vcmask 195584
        %v1384 = vsel %vm1383, %v1382, %v1378
        %v1385 = vld [vmem:[#allocation16] sm:$0xff]
        %v1386 = vld [vmem:[#allocation16 + $0x8] sm:$0xff]
        %v1387 = vld [vmem:[#allocation16 + $0x10] sm:$0xff]
        %v1388 = vld [vmem:[#allocation16 + $0x18] sm:$0xff]
        %v1389 = vld [vmem:[%s9] sm:$0x1]
        %v1391 = vlaneseq
        %v1392 = vshrl.u32 %v1391, 7
        %v1393 = vsub.s32 0, %v1392
        %v1394 = vrot.slane %v1389, %v1393
        %v1397 = vsel %vm763, %v1384, 0
        %1399 = vmatprep.subr.mxu0 0.0
        %1400 = vmatpush1.msra.mxu0 0.0
        %1401 = vmatprep.subr.mxu0 0.0
        %1402 = vmatpush1.msra.mxu0 0.0
        %1403 = vmatprep.subr.mxu0 0.0
        %1404 = vmatpush1.msra.mxu0 0.0
        %1405 = vmatprep.subr.mxu0 0.0
        %1406 = vmatpush1.msra.mxu0 0.0
        %1407 = vmatprep.subr.mxu0 0.0
        %1408 = vmatpush1.msra.mxu0 0.0
        %1409 = vmatprep.subr.mxu0 0.0
        %1410 = vmatpush1.msra.mxu0 0.0
        %1411 = vmatprep.subr.mxu0 0.0
        %1412 = vmatpush1.msra.mxu0 0.0
        %1413 = vmatprep.subr.mxu0 0.0
        %1414 = vmatpush1.msra.mxu0 0.0
        %1415 = vmatprep.subr.mxu0 0.0
        %1416 = vmatpush1.msra.mxu0 0.0
        %1417 = vmatprep.subr.mxu0 0.0
        %1418 = vmatpush1.msra.mxu0 0.0
        %1419 = vmatprep.subr.mxu0 0.0
        %1420 = vmatpush1.msra.mxu0 0.0
        %1421 = vmatprep.subr.mxu0 0.0
        %1422 = vmatpush1.msra.mxu0 0.0
        %1423 = vmatprep.subr.mxu0 0.0
        %1424 = vmatpush1.msra.mxu0 %v1388
        %1425 = vmatprep.subr.mxu0 0.0
        %1426 = vmatpush1.msra.mxu0 %v1387
        %1427 = vmatprep.subr.mxu0 0.0
        %1428 = vmatpush1.msra.mxu0 %v1386
        %1429 = vmatprep.subr.mxu0 0.0
        %1430 = vmatpush1.msra.mxu0 %v1385
        %1431 = vmatprep.subr.mxu0 0.0
        %1432 = vmatpush2.msra.mxu0 0.0
        %1433 = vmatprep.subr.mxu0 0.0
        %1434 = vmatpush2.msra.mxu0 0.0
        %1435 = vmatprep.subr.mxu0 0.0
        %1436 = vmatpush2.msra.mxu0 0.0
        %1437 = vmatprep.subr.mxu0 0.0
        %1438 = vmatpush2.msra.mxu0 0.0
        %1439 = vmatprep.subr.mxu0 0.0
        %1440 = vmatpush2.msra.mxu0 0.0
        %1441 = vmatprep.subr.mxu0 0.0
        %1442 = vmatpush2.msra.mxu0 0.0
        %1443 = vmatprep.subr.mxu0 0.0
        %1444 = vmatpush2.msra.mxu0 0.0
        %1445 = vmatprep.subr.mxu0 0.0
        %1446 = vmatpush2.msra.mxu0 0.0
        %1447 = vmatprep.subr.mxu0 0.0
        %1448 = vmatpush2.msra.mxu0 0.0
        %1449 = vmatprep.subr.mxu0 0.0
        %1450 = vmatpush2.msra.mxu0 0.0
        %1451 = vmatprep.subr.mxu0 0.0
        %1452 = vmatpush2.msra.mxu0 0.0
        %1453 = vmatprep.subr.mxu0 0.0
        %1454 = vmatpush2.msra.mxu0 0.0
        %1455 = vmatprep.subr.mxu0 0.0
        %1456 = vmatpush2.msra.mxu0 0.0
        %1457 = vmatprep.subr.mxu0 0.0
        %1458 = vmatpush2.msra.mxu0 0.0
        %1459 = vmatprep.subr.mxu0 0.0
        %1460 = vmatpush2.msra.mxu0 0.0
        %1461 = vmatprep.subr.mxu0 0.0
        %1462 = vmatpush2.msra.mxu0 0.0
        %1463 = vmatprep.mubr.f32.mxu0 0.0
        %1464 = vmatmul.mubr.f32.gmra.mxu0 %v1397
        %v1465 = vpop.f32.mrf.mxu0
        %v1466 = vadd.f32 %v1394, %v1465
        %v1467 = vpop.f32.mrf.mxu0
        %1468 = vdwg.mxu0
        %v1469 = vld [vmem:[%s10] sm:$0x1]
        %v1471 = vlaneseq
        %v1472 = vshrl.u32 %v1471, 7
        %v1473 = vsub.s32 0, %v1472
        %v1474 = vrot.slane %v1469, %v1473
        %v1476 = vmul.f32 %v1466, %v1474
        %s1477 = scalar_lea.vmem %s440, %s756 [#allocation5]
        %v1478 = vld [vmem:[%s1477] sm:$0xff]
        %v1479 = vadd.f32 %v1476, %v1478
        %1480 = vst.msk [vmem:[%s503] sm:$0xff] %vm763, %v1479
        %s1481 = sand.u32 %s290, 1
        %s1482 = scalar_lea.sflag [#allocation7], %s1481
        %s1483 = sand.u32 %s290, 1
        %s1484 = smul.addr %s1483, 8
        %s1485 = scalar_lea.vmem [#allocation18], %s1484
        // Predicated region
        $region97: #{tpu_custom_call.1} parent=63 // pred_check
          %p1486 = pneg %p300
        $region98: #{tpu_custom_call.1} parent=63 // pred_check_branch
          %1488 = sbr.rel (%p1486) target = $region100
        $region99: #{tpu_custom_call.1} parent=63 // pred_region
          %s1490 = ssub.s32 128, 128
          %1491 = vsyncadd %s1482, %s1490
          %s1492 = smul.addr %s36, 2
          %s1493 = sadd.s32 %s37, %s1492
          %s1494 = smul.addr %s1493, 128
          %s1495 = scalar_lea.hbm %s11, %s1494
          %s1497 = sshll.u32 %s1485, 4
          %s1498 = int_to_ptr.vmem [resolvable:$true] %s1497
          %1500 = dma.vmem_to_hbm [thread:$0]  %s1498, 128, %s1495, %s1482
        $region100: #{tpu_custom_call.1} parent=63 // pred_fallthru
          _
      $region64: #{tpu_custom_call.1} parent=5 // pred_fallthru
        _
      %p1501 = scmp.le.s32.totalorder 2, %s27
      // Predicated region
      $region101: #{tpu_custom_call.1} parent=5 // pred_check
        %p1502 = pneg %p1501
      $region102: #{tpu_custom_call.1} parent=5 // pred_check_branch
        %1504 = sbr.rel (%p1502) target = $region104
      $region103: #{tpu_custom_call.1} parent=5 // pred_region
        %s1505 = ssub.s32 %s27, 2
        // Predicated region
        $region105: #{tpu_custom_call.1} parent=103 // pred_check
          %p1506 = pneg %p306
        $region106: #{tpu_custom_call.1} parent=103 // pred_check_branch
          %1508 = sbr.rel (%p1506) target = $region108
        $region107: #{tpu_custom_call.1} parent=103 // pred_region
          %s1509 = sand.u32 %s291, 1
          %s1510 = scalar_lea.sflag [#allocation7], %s1509
          %s1511 = sand.u32 %s291, 1
          %s1512 = smul.addr %s1511, 8
          %s1513 = scalar_lea.vmem [#allocation18], %s1512
          %1514 = dma.done %s1510, 128
        $region108: #{tpu_custom_call.1} parent=103 // pred_fallthru
          _
      $region104: #{tpu_custom_call.1} parent=5 // pred_fallthru
        _
    $region6: #{tpu_custom_call.1} parent=1 // loop_footer
      %s31 = sadd.s32 1, %s27
    $region7: #{tpu_custom_call.1} parent=1 // loop_footer_branch
      %26 = sbr.rel target = $region3
    $region8: #{tpu_custom_call.1} parent=1 // loop_exit
      _
    %1515 = vsyncpa [#allocation6], 1
    %s1516 = scalar_lea.sflag [#allocation6], 1
    %1517 = vsyncpa %s1516, 1
    %1518 = vsyncpa [#allocation10], 1
    %1519 = vsyncpa [#allocation13], 1
    %1520 = vsyncpa [#allocation17], 1
    %1521 = vsyncpa [#allocation7], 1
    %s1522 = scalar_lea.sflag [#allocation7], 1
    %1523 = vsyncpa %s1522, 1
    %1524 = vsyncpa [#allocation8], 1
    %s1525 = scalar_lea.sflag [#allocation8], 1
    %1526 = vsyncpa %s1525, 1

</llo_original>
